<compile_context>
chip_gen: v5e
topology: v5e:2x2
jax: 0.10.0
libtpu: 0.0.40
codegen_flags: <defaults>
</compile_context>

<pallas_src>
import jax
import jax.numpy as jnp
from jax.experimental import pallas as pl
from jax.experimental.pallas import tpu as pltpu

HIDDEN = 50          # module hard-codes input_size = hidden_size = 50
N_CLASSES = 2
VOCAB = 100
SEQ_LEN = 8
HP = 128             # padded (lane-aligned) hidden / class width


def _gru_head_kernel(x_ref, h0_ref, wih_ref, whh_ref, bgi_ref, bhhn_ref,
                     wout_ref, bout_ref, out_ref):
    """Full GRU recurrence + Linear + LogSoftmax in one kernel (padded to 128 lanes)."""
    hp = h0_ref.shape[1]                        # 128
    seq_len = x_ref.shape[0]                    # compile-time constant

    # Hoisted input projection for ALL timesteps: one batched MXU matmul.
    # bgi already contains b_ih (all gates) + b_hh (r, z gates).
    gi_all = jnp.dot(x_ref[...], wih_ref[...],
                     preferred_element_type=jnp.float32) + bgi_ref[...]   # (seq, 3*HP)

    whh = whh_ref[...]                          # (HP, 3*HP)
    b_hh_n = bhhn_ref[...]                      # (1, HP)
    h = h0_ref[...]                             # (1, HP), carried in vregs

    # Static unroll: SEQ_LEN is fixed and small; keeps the recurrence in registers
    # and gives the scheduler full visibility across steps.
    for t in range(seq_len):
        gi = gi_all[t:t + 1, :]                                         # (1, 3*HP)
        gh = jnp.dot(h, whh, preferred_element_type=jnp.float32)        # (1, 3*HP)

        r = jax.nn.sigmoid(gi[:, 0:hp] + gh[:, 0:hp])
        z = jax.nn.sigmoid(gi[:, hp:2 * hp] + gh[:, hp:2 * hp])
        n = jnp.tanh(gi[:, 2 * hp:3 * hp] + r * (gh[:, 2 * hp:3 * hp] + b_hh_n))
        h = (1.0 - z) * n + z * h

    # TODO(synk): nn.Dropout(p=0.2) on the is_train=True path is skipped
    # (deterministic eval path); GRU's dropout=0.4 is a no-op for a 1-layer GRU.

    logits = jnp.dot(h, wout_ref[...],
                     preferred_element_type=jnp.float32) + bout_ref[...]  # (1, HP)

    # Stable log-softmax; padded class lanes carry a -1e30 bias so they vanish.
    m = jnp.max(logits, axis=-1, keepdims=True)
    lse = m + jnp.log(jnp.sum(jnp.exp(logits - m), axis=-1, keepdims=True))
    out_ref[...] = logits - lse


def _pad_gru_weight(w):
    """(3H, H) PyTorch GRU weight -> (HP, 3*HP) with each gate in its own 128-lane block."""
    wp = jnp.zeros((HP, 3 * HP), jnp.float32)
    for g in range(3):
        blk = w[g * HIDDEN:(g + 1) * HIDDEN, :].T.astype(jnp.float32)   # (H_in, H_out)
        wp = wp.at[:HIDDEN, g * HP:g * HP + HIDDEN].set(blk)
    return wp


def rnn_model_forward(input_ids, hidden, params, is_train=False):
    """JAX/Pallas equivalent of rnn_model.forward (eval path).

    input_ids : (seq_len,) int32 token ids
    hidden    : (1, 1, HIDDEN) initial hidden state
    Returns (1, N_CLASSES) log-probabilities.
    """
    seq_len = input_ids.shape[0]

    # ---- glue: embedding lookup + one-time padded weight re-layout (plain JAX) ----
    emb = params["embedding"][input_ids].astype(jnp.float32)            # (seq, H)
    x_p = jnp.zeros((seq_len, HP), jnp.float32).at[:, :HIDDEN].set(emb)

    h0_p = jnp.zeros((1, HP), jnp.float32).at[:, :HIDDEN].set(
        hidden.reshape(1, HIDDEN).astype(jnp.float32))

    w_ih_p = _pad_gru_weight(params["w_ih"])                            # (HP, 3*HP)
    w_hh_p = _pad_gru_weight(params["w_hh"])                            # (HP, 3*HP)

    # Combined per-gate bias added to the hoisted input projection:
    #   b_ih for all gates, plus b_hh for the r and z gates (linear folding).
    bgi = jnp.zeros((1, 3 * HP), jnp.float32)
    for g in range(3):
        bg = params["b_ih"][g * HIDDEN:(g + 1) * HIDDEN].astype(jnp.float32)
        if g < 2:  # r, z gates: b_hh adds linearly before the sigmoid
            bg = bg + params["b_hh"][g * HIDDEN:(g + 1) * HIDDEN].astype(jnp.float32)
        bgi = bgi.at[0, g * HP:g * HP + HIDDEN].set(bg)
    # n-gate hidden bias stays inside the r * (...) term.
    b_hh_n = jnp.zeros((1, HP), jnp.float32).at[0, :HIDDEN].set(
        params["b_hh"][2 * HIDDEN:3 * HIDDEN].astype(jnp.float32))

    w_out_p = jnp.zeros((HP, HP), jnp.float32).at[:HIDDEN, :N_CLASSES].set(
        params["w_h2o"].T.astype(jnp.float32))
    b_out_p = jnp.full((1, HP), -1e30, jnp.float32).at[0, :N_CLASSES].set(
        params["b_h2o"].astype(jnp.float32))

    vmem = pl.BlockSpec(memory_space=pltpu.MemorySpace.VMEM)

    logprobs_p = pl.pallas_call(
        _gru_head_kernel,
        out_shape=jax.ShapeDtypeStruct((1, HP), jnp.float32),
        in_specs=[vmem] * 8,
        out_specs=vmem,
    )(x_p, h0_p, w_ih_p, w_hh_p, bgi, b_hh_n, w_out_p, b_out_p)

    return logprobs_p[:, :N_CLASSES]                                    # (1, N_CLASSES)


def init_params(key):
    k = jax.random.split(key, 6)
    bound = 1.0 / jnp.sqrt(HIDDEN)
    return {
        # nn.Embedding default init ~ N(0, 1)
        "embedding": jax.random.normal(k[0], (VOCAB, HIDDEN), jnp.float32),
        # nn.GRU params: U(-1/sqrt(H), 1/sqrt(H)), gate order [r, z, n]
        "w_ih": jax.random.uniform(k[1], (3 * HIDDEN, HIDDEN), jnp.float32, -bound, bound),
        "w_hh": jax.random.uniform(k[2], (3 * HIDDEN, HIDDEN), jnp.float32, -bound, bound),
        "b_ih": jax.random.uniform(k[3], (3 * HIDDEN,), jnp.float32, -bound, bound),
        "b_hh": jax.random.uniform(k[4], (3 * HIDDEN,), jnp.float32, -bound, bound),
        # nn.Linear(H, C)
        "w_h2o": jax.random.uniform(k[5], (N_CLASSES, HIDDEN), jnp.float32, -bound, bound),
        "b_h2o": jnp.zeros((N_CLASSES,), jnp.float32),
    }


def _reference_forward(input_ids, hidden, params):
    """Pure-JAX (unpadded) GRU + Linear + LogSoftmax, PyTorch semantics."""
    emb = params["embedding"][input_ids].astype(jnp.float32)   # (seq, H)
    h = hidden.reshape(1, HIDDEN).astype(jnp.float32)
    w_ih, w_hh = params["w_ih"], params["w_hh"]
    b_ih, b_hh = params["b_ih"], params["b_hh"]
    H = HIDDEN
    for t in range(emb.shape[0]):
        x = emb[t:t + 1, :]
        gi = x @ w_ih.T + b_ih
        gh = h @ w_hh.T + b_hh
        r = jax.nn.sigmoid(gi[:, 0:H] + gh[:, 0:H])
        z = jax.nn.sigmoid(gi[:, H:2 * H] + gh[:, H:2 * H])
        n = jnp.tanh(gi[:, 2 * H:3 * H] + r * gh[:, 2 * H:3 * H])
        h = (1.0 - z) * n + z * h
    logits = h @ params["w_h2o"].T + params["b_h2o"]
    return jax.nn.log_softmax(logits, axis=-1)


if __name__ == "__main__":
    key = jax.random.PRNGKey(0)
    pkey, ikey = jax.random.split(key)
    params = init_params(pkey)

    input_ids = jax.random.randint(ikey, (SEQ_LEN,), 0, VOCAB, dtype=jnp.int32)
    hidden0 = jnp.zeros((1, 1, HIDDEN), jnp.float32)    # initHidden()

    logprobs = rnn_model_forward(input_ids, hidden0, params, is_train=False)
    logprobs = jax.block_until_ready(logprobs)

    assert logprobs.shape == (1, N_CLASSES)
    assert bool(jnp.all(jnp.isfinite(logprobs)))
    # log-softmax sanity: probabilities sum to 1
    assert bool(jnp.allclose(jnp.sum(jnp.exp(logprobs)), 1.0, atol=1e-5))
    # parity with the unpadded f32 reference
    ref = _reference_forward(input_ids, hidden0, params)
    assert bool(jnp.allclose(logprobs, ref, atol=1e-5, rtol=1e-5))
    print("KERNEL_OK")
</pallas_src>

<mosaic_0001>
module attributes {stable_mosaic.version = 11 : i64} {
  func.func @_gru_head_kernel(%arg0: memref<8x128xf32, #tpu.memory_space<vmem>>, %arg1: memref<1x128xf32, #tpu.memory_space<vmem>>, %arg2: memref<128x384xf32, #tpu.memory_space<vmem>>, %arg3: memref<128x384xf32, #tpu.memory_space<vmem>>, %arg4: memref<1x384xf32, #tpu.memory_space<vmem>>, %arg5: memref<1x128xf32, #tpu.memory_space<vmem>>, %arg6: memref<128x128xf32, #tpu.memory_space<vmem>>, %arg7: memref<1x128xf32, #tpu.memory_space<vmem>>, %arg8: memref<1x128xf32, #tpu.memory_space<vmem>>) attributes {dimension_semantics = [], scalar_prefetch = 0 : i64, scratch_operands = 0 : i64, tpu.core_type = #tpu.core_type<tc>} {
    %c0 = arith.constant 0 : index
    %c0_0 = arith.constant 0 : index
    %0 = vector.load %arg0[%c0, %c0_0] : memref<8x128xf32, #tpu.memory_space<vmem>>, vector<8x128xf32>
    %c0_1 = arith.constant 0 : index
    %c0_2 = arith.constant 0 : index
    %1 = vector.load %arg2[%c0_1, %c0_2] : memref<128x384xf32, #tpu.memory_space<vmem>>, vector<128x384xf32>
    %cst = arith.constant dense<0.000000e+00> : vector<8x384xf32>
    %2 = tpu.matmul %0, %1, %cst {dimension_numbers = #tpu.dot_dimension_numbers<[1], [0], [0], [1], [0, 0, 1, 1], [], []>} : vector<8x128xf32>, vector<128x384xf32>, vector<8x384xf32> -> vector<8x384xf32>
    %c0_3 = arith.constant 0 : index
    %c0_4 = arith.constant 0 : index
    %3 = vector.load %arg4[%c0_3, %c0_4] : memref<1x384xf32, #tpu.memory_space<vmem>>, vector<1x384xf32>
    %4 = vector.broadcast %3 : vector<1x384xf32> to vector<8x384xf32>
    %5 = arith.addf %2, %4 : vector<8x384xf32>
    %c0_5 = arith.constant 0 : index
    %c0_6 = arith.constant 0 : index
    %6 = vector.load %arg3[%c0_5, %c0_6] : memref<128x384xf32, #tpu.memory_space<vmem>>, vector<128x384xf32>
    %c0_7 = arith.constant 0 : index
    %c0_8 = arith.constant 0 : index
    %7 = vector.load %arg5[%c0_7, %c0_8] : memref<1x128xf32, #tpu.memory_space<vmem>>, vector<1x128xf32>
    %c0_9 = arith.constant 0 : index
    %c0_10 = arith.constant 0 : index
    %8 = vector.load %arg1[%c0_9, %c0_10] : memref<1x128xf32, #tpu.memory_space<vmem>>, vector<1x128xf32>
    %9 = vector.extract_strided_slice %5 {offsets = [0, 0], sizes = [1, 384], strides = [1, 1]} : vector<8x384xf32> to vector<1x384xf32>
    %cst_11 = arith.constant dense<0.000000e+00> : vector<1x384xf32>
    %10 = tpu.matmul %8, %6, %cst_11 {dimension_numbers = #tpu.dot_dimension_numbers<[1], [0], [0], [1], [0, 0, 1, 1], [], []>} : vector<1x128xf32>, vector<128x384xf32>, vector<1x384xf32> -> vector<1x384xf32>
    %11 = vector.extract_strided_slice %9 {offsets = [0, 0], sizes = [1, 128], strides = [1, 1]} : vector<1x384xf32> to vector<1x128xf32>
    %12 = vector.extract_strided_slice %10 {offsets = [0, 0], sizes = [1, 128], strides = [1, 1]} : vector<1x384xf32> to vector<1x128xf32>
    %13 = arith.addf %11, %12 : vector<1x128xf32>
    %14 = arith.negf %13 : vector<1x128xf32>
    %15 = math.exp %14 : vector<1x128xf32>
    %cst_12 = arith.constant 1.000000e+00 : f32
    %16 = vector.broadcast %cst_12 : f32 to vector<1x128xf32>
    %17 = arith.addf %16, %15 : vector<1x128xf32>
    %18 = arith.divf %16, %17 : vector<1x128xf32>
    %19 = vector.extract_strided_slice %9 {offsets = [0, 128], sizes = [1, 128], strides = [1, 1]} : vector<1x384xf32> to vector<1x128xf32>
    %20 = vector.extract_strided_slice %10 {offsets = [0, 128], sizes = [1, 128], strides = [1, 1]} : vector<1x384xf32> to vector<1x128xf32>
    %21 = arith.addf %19, %20 : vector<1x128xf32>
    %22 = arith.negf %21 : vector<1x128xf32>
    %23 = math.exp %22 : vector<1x128xf32>
    %cst_13 = arith.constant 1.000000e+00 : f32
    %24 = vector.broadcast %cst_13 : f32 to vector<1x128xf32>
    %25 = arith.addf %24, %23 : vector<1x128xf32>
    %26 = arith.divf %24, %25 : vector<1x128xf32>
    %27 = vector.extract_strided_slice %9 {offsets = [0, 256], sizes = [1, 128], strides = [1, 1]} : vector<1x384xf32> to vector<1x128xf32>
    %28 = vector.extract_strided_slice %10 {offsets = [0, 256], sizes = [1, 128], strides = [1, 1]} : vector<1x384xf32> to vector<1x128xf32>
    %29 = arith.addf %28, %7 : vector<1x128xf32>
    %30 = arith.mulf %18, %29 : vector<1x128xf32>
    %31 = arith.addf %27, %30 : vector<1x128xf32>
    %32 = math.tanh %31 : vector<1x128xf32>
    %cst_14 = arith.constant 1.000000e+00 : f32
    %33 = vector.broadcast %cst_14 : f32 to vector<1x128xf32>
    %34 = arith.subf %33, %26 : vector<1x128xf32>
    %35 = arith.mulf %34, %32 : vector<1x128xf32>
    %36 = arith.mulf %26, %8 : vector<1x128xf32>
    %37 = arith.addf %35, %36 : vector<1x128xf32>
    %38 = vector.extract_strided_slice %5 {offsets = [1, 0], sizes = [1, 384], strides = [1, 1]} : vector<8x384xf32> to vector<1x384xf32>
    %cst_15 = arith.constant dense<0.000000e+00> : vector<1x384xf32>
    %39 = tpu.matmul %37, %6, %cst_15 {dimension_numbers = #tpu.dot_dimension_numbers<[1], [0], [0], [1], [0, 0, 1, 1], [], []>} : vector<1x128xf32>, vector<128x384xf32>, vector<1x384xf32> -> vector<1x384xf32>
    %40 = vector.extract_strided_slice %38 {offsets = [0, 0], sizes = [1, 128], strides = [1, 1]} : vector<1x384xf32> to vector<1x128xf32>
    %41 = vector.extract_strided_slice %39 {offsets = [0, 0], sizes = [1, 128], strides = [1, 1]} : vector<1x384xf32> to vector<1x128xf32>
    %42 = arith.addf %40, %41 : vector<1x128xf32>
    %43 = arith.negf %42 : vector<1x128xf32>
    %44 = math.exp %43 : vector<1x128xf32>
    %cst_16 = arith.constant 1.000000e+00 : f32
    %45 = vector.broadcast %cst_16 : f32 to vector<1x128xf32>
    %46 = arith.addf %45, %44 : vector<1x128xf32>
    %47 = arith.divf %45, %46 : vector<1x128xf32>
    %48 = vector.extract_strided_slice %38 {offsets = [0, 128], sizes = [1, 128], strides = [1, 1]} : vector<1x384xf32> to vector<1x128xf32>
    %49 = vector.extract_strided_slice %39 {offsets = [0, 128], sizes = [1, 128], strides = [1, 1]} : vector<1x384xf32> to vector<1x128xf32>
    %50 = arith.addf %48, %49 : vector<1x128xf32>
    %51 = arith.negf %50 : vector<1x128xf32>
    %52 = math.exp %51 : vector<1x128xf32>
    %cst_17 = arith.constant 1.000000e+00 : f32
    %53 = vector.broadcast %cst_17 : f32 to vector<1x128xf32>
    %54 = arith.addf %53, %52 : vector<1x128xf32>
    %55 = arith.divf %53, %54 : vector<1x128xf32>
    %56 = vector.extract_strided_slice %38 {offsets = [0, 256], sizes = [1, 128], strides = [1, 1]} : vector<1x384xf32> to vector<1x128xf32>
    %57 = vector.extract_strided_slice %39 {offsets = [0, 256], sizes = [1, 128], strides = [1, 1]} : vector<1x384xf32> to vector<1x128xf32>
    %58 = arith.addf %57, %7 : vector<1x128xf32>
    %59 = arith.mulf %47, %58 : vector<1x128xf32>
    %60 = arith.addf %56, %59 : vector<1x128xf32>
    %61 = math.tanh %60 : vector<1x128xf32>
    %cst_18 = arith.constant 1.000000e+00 : f32
    %62 = vector.broadcast %cst_18 : f32 to vector<1x128xf32>
    %63 = arith.subf %62, %55 : vector<1x128xf32>
    %64 = arith.mulf %63, %61 : vector<1x128xf32>
    %65 = arith.mulf %55, %37 : vector<1x128xf32>
    %66 = arith.addf %64, %65 : vector<1x128xf32>
    %67 = vector.extract_strided_slice %5 {offsets = [2, 0], sizes = [1, 384], strides = [1, 1]} : vector<8x384xf32> to vector<1x384xf32>
    %cst_19 = arith.constant dense<0.000000e+00> : vector<1x384xf32>
    %68 = tpu.matmul %66, %6, %cst_19 {dimension_numbers = #tpu.dot_dimension_numbers<[1], [0], [0], [1], [0, 0, 1, 1], [], []>} : vector<1x128xf32>, vector<128x384xf32>, vector<1x384xf32> -> vector<1x384xf32>
    %69 = vector.extract_strided_slice %67 {offsets = [0, 0], sizes = [1, 128], strides = [1, 1]} : vector<1x384xf32> to vector<1x128xf32>
    %70 = vector.extract_strided_slice %68 {offsets = [0, 0], sizes = [1, 128], strides = [1, 1]} : vector<1x384xf32> to vector<1x128xf32>
    %71 = arith.addf %69, %70 : vector<1x128xf32>
    %72 = arith.negf %71 : vector<1x128xf32>
    %73 = math.exp %72 : vector<1x128xf32>
    %cst_20 = arith.constant 1.000000e+00 : f32
    %74 = vector.broadcast %cst_20 : f32 to vector<1x128xf32>
    %75 = arith.addf %74, %73 : vector<1x128xf32>
    %76 = arith.divf %74, %75 : vector<1x128xf32>
    %77 = vector.extract_strided_slice %67 {offsets = [0, 128], sizes = [1, 128], strides = [1, 1]} : vector<1x384xf32> to vector<1x128xf32>
    %78 = vector.extract_strided_slice %68 {offsets = [0, 128], sizes = [1, 128], strides = [1, 1]} : vector<1x384xf32> to vector<1x128xf32>
    %79 = arith.addf %77, %78 : vector<1x128xf32>
    %80 = arith.negf %79 : vector<1x128xf32>
    %81 = math.exp %80 : vector<1x128xf32>
    %cst_21 = arith.constant 1.000000e+00 : f32
    %82 = vector.broadcast %cst_21 : f32 to vector<1x128xf32>
    %83 = arith.addf %82, %81 : vector<1x128xf32>
    %84 = arith.divf %82, %83 : vector<1x128xf32>
    %85 = vector.extract_strided_slice %67 {offsets = [0, 256], sizes = [1, 128], strides = [1, 1]} : vector<1x384xf32> to vector<1x128xf32>
    %86 = vector.extract_strided_slice %68 {offsets = [0, 256], sizes = [1, 128], strides = [1, 1]} : vector<1x384xf32> to vector<1x128xf32>
    %87 = arith.addf %86, %7 : vector<1x128xf32>
    %88 = arith.mulf %76, %87 : vector<1x128xf32>
    %89 = arith.addf %85, %88 : vector<1x128xf32>
    %90 = math.tanh %89 : vector<1x128xf32>
    %cst_22 = arith.constant 1.000000e+00 : f32
    %91 = vector.broadcast %cst_22 : f32 to vector<1x128xf32>
    %92 = arith.subf %91, %84 : vector<1x128xf32>
    %93 = arith.mulf %92, %90 : vector<1x128xf32>
    %94 = arith.mulf %84, %66 : vector<1x128xf32>
    %95 = arith.addf %93, %94 : vector<1x128xf32>
    %96 = vector.extract_strided_slice %5 {offsets = [3, 0], sizes = [1, 384], strides = [1, 1]} : vector<8x384xf32> to vector<1x384xf32>
    %cst_23 = arith.constant dense<0.000000e+00> : vector<1x384xf32>
    %97 = tpu.matmul %95, %6, %cst_23 {dimension_numbers = #tpu.dot_dimension_numbers<[1], [0], [0], [1], [0, 0, 1, 1], [], []>} : vector<1x128xf32>, vector<128x384xf32>, vector<1x384xf32> -> vector<1x384xf32>
    %98 = vector.extract_strided_slice %96 {offsets = [0, 0], sizes = [1, 128], strides = [1, 1]} : vector<1x384xf32> to vector<1x128xf32>
    %99 = vector.extract_strided_slice %97 {offsets = [0, 0], sizes = [1, 128], strides = [1, 1]} : vector<1x384xf32> to vector<1x128xf32>
    %100 = arith.addf %98, %99 : vector<1x128xf32>
    %101 = arith.negf %100 : vector<1x128xf32>
    %102 = math.exp %101 : vector<1x128xf32>
    %cst_24 = arith.constant 1.000000e+00 : f32
    %103 = vector.broadcast %cst_24 : f32 to vector<1x128xf32>
    %104 = arith.addf %103, %102 : vector<1x128xf32>
    %105 = arith.divf %103, %104 : vector<1x128xf32>
    %106 = vector.extract_strided_slice %96 {offsets = [0, 128], sizes = [1, 128], strides = [1, 1]} : vector<1x384xf32> to vector<1x128xf32>
    %107 = vector.extract_strided_slice %97 {offsets = [0, 128], sizes = [1, 128], strides = [1, 1]} : vector<1x384xf32> to vector<1x128xf32>
    %108 = arith.addf %106, %107 : vector<1x128xf32>
    %109 = arith.negf %108 : vector<1x128xf32>
    %110 = math.exp %109 : vector<1x128xf32>
    %cst_25 = arith.constant 1.000000e+00 : f32
    %111 = vector.broadcast %cst_25 : f32 to vector<1x128xf32>
    %112 = arith.addf %111, %110 : vector<1x128xf32>
    %113 = arith.divf %111, %112 : vector<1x128xf32>
    %114 = vector.extract_strided_slice %96 {offsets = [0, 256], sizes = [1, 128], strides = [1, 1]} : vector<1x384xf32> to vector<1x128xf32>
    %115 = vector.extract_strided_slice %97 {offsets = [0, 256], sizes = [1, 128], strides = [1, 1]} : vector<1x384xf32> to vector<1x128xf32>
    %116 = arith.addf %115, %7 : vector<1x128xf32>
    %117 = arith.mulf %105, %116 : vector<1x128xf32>
    %118 = arith.addf %114, %117 : vector<1x128xf32>
    %119 = math.tanh %118 : vector<1x128xf32>
    %cst_26 = arith.constant 1.000000e+00 : f32
    %120 = vector.broadcast %cst_26 : f32 to vector<1x128xf32>
    %121 = arith.subf %120, %113 : vector<1x128xf32>
    %122 = arith.mulf %121, %119 : vector<1x128xf32>
    %123 = arith.mulf %113, %95 : vector<1x128xf32>
    %124 = arith.addf %122, %123 : vector<1x128xf32>
    %125 = vector.extract_strided_slice %5 {offsets = [4, 0], sizes = [1, 384], strides = [1, 1]} : vector<8x384xf32> to vector<1x384xf32>
    %cst_27 = arith.constant dense<0.000000e+00> : vector<1x384xf32>
    %126 = tpu.matmul %124, %6, %cst_27 {dimension_numbers = #tpu.dot_dimension_numbers<[1], [0], [0], [1], [0, 0, 1, 1], [], []>} : vector<1x128xf32>, vector<128x384xf32>, vector<1x384xf32> -> vector<1x384xf32>
    %127 = vector.extract_strided_slice %125 {offsets = [0, 0], sizes = [1, 128], strides = [1, 1]} : vector<1x384xf32> to vector<1x128xf32>
    %128 = vector.extract_strided_slice %126 {offsets = [0, 0], sizes = [1, 128], strides = [1, 1]} : vector<1x384xf32> to vector<1x128xf32>
    %129 = arith.addf %127, %128 : vector<1x128xf32>
    %130 = arith.negf %129 : vector<1x128xf32>
    %131 = math.exp %130 : vector<1x128xf32>
    %cst_28 = arith.constant 1.000000e+00 : f32
    %132 = vector.broadcast %cst_28 : f32 to vector<1x128xf32>
    %133 = arith.addf %132, %131 : vector<1x128xf32>
    %134 = arith.divf %132, %133 : vector<1x128xf32>
    %135 = vector.extract_strided_slice %125 {offsets = [0, 128], sizes = [1, 128], strides = [1, 1]} : vector<1x384xf32> to vector<1x128xf32>
    %136 = vector.extract_strided_slice %126 {offsets = [0, 128], sizes = [1, 128], strides = [1, 1]} : vector<1x384xf32> to vector<1x128xf32>
    %137 = arith.addf %135, %136 : vector<1x128xf32>
    %138 = arith.negf %137 : vector<1x128xf32>
    %139 = math.exp %138 : vector<1x128xf32>
    %cst_29 = arith.constant 1.000000e+00 : f32
    %140 = vector.broadcast %cst_29 : f32 to vector<1x128xf32>
    %141 = arith.addf %140, %139 : vector<1x128xf32>
    %142 = arith.divf %140, %141 : vector<1x128xf32>
    %143 = vector.extract_strided_slice %125 {offsets = [0, 256], sizes = [1, 128], strides = [1, 1]} : vector<1x384xf32> to vector<1x128xf32>
    %144 = vector.extract_strided_slice %126 {offsets = [0, 256], sizes = [1, 128], strides = [1, 1]} : vector<1x384xf32> to vector<1x128xf32>
    %145 = arith.addf %144, %7 : vector<1x128xf32>
    %146 = arith.mulf %134, %145 : vector<1x128xf32>
    %147 = arith.addf %143, %146 : vector<1x128xf32>
    %148 = math.tanh %147 : vector<1x128xf32>
    %cst_30 = arith.constant 1.000000e+00 : f32
    %149 = vector.broadcast %cst_30 : f32 to vector<1x128xf32>
    %150 = arith.subf %149, %142 : vector<1x128xf32>
    %151 = arith.mulf %150, %148 : vector<1x128xf32>
    %152 = arith.mulf %142, %124 : vector<1x128xf32>
    %153 = arith.addf %151, %152 : vector<1x128xf32>
    %154 = vector.extract_strided_slice %5 {offsets = [5, 0], sizes = [1, 384], strides = [1, 1]} : vector<8x384xf32> to vector<1x384xf32>
    %cst_31 = arith.constant dense<0.000000e+00> : vector<1x384xf32>
    %155 = tpu.matmul %153, %6, %cst_31 {dimension_numbers = #tpu.dot_dimension_numbers<[1], [0], [0], [1], [0, 0, 1, 1], [], []>} : vector<1x128xf32>, vector<128x384xf32>, vector<1x384xf32> -> vector<1x384xf32>
    %156 = vector.extract_strided_slice %154 {offsets = [0, 0], sizes = [1, 128], strides = [1, 1]} : vector<1x384xf32> to vector<1x128xf32>
    %157 = vector.extract_strided_slice %155 {offsets = [0, 0], sizes = [1, 128], strides = [1, 1]} : vector<1x384xf32> to vector<1x128xf32>
    %158 = arith.addf %156, %157 : vector<1x128xf32>
    %159 = arith.negf %158 : vector<1x128xf32>
    %160 = math.exp %159 : vector<1x128xf32>
    %cst_32 = arith.constant 1.000000e+00 : f32
    %161 = vector.broadcast %cst_32 : f32 to vector<1x128xf32>
    %162 = arith.addf %161, %160 : vector<1x128xf32>
    %163 = arith.divf %161, %162 : vector<1x128xf32>
    %164 = vector.extract_strided_slice %154 {offsets = [0, 128], sizes = [1, 128], strides = [1, 1]} : vector<1x384xf32> to vector<1x128xf32>
    %165 = vector.extract_strided_slice %155 {offsets = [0, 128], sizes = [1, 128], strides = [1, 1]} : vector<1x384xf32> to vector<1x128xf32>
    %166 = arith.addf %164, %165 : vector<1x128xf32>
    %167 = arith.negf %166 : vector<1x128xf32>
    %168 = math.exp %167 : vector<1x128xf32>
    %cst_33 = arith.constant 1.000000e+00 : f32
    %169 = vector.broadcast %cst_33 : f32 to vector<1x128xf32>
    %170 = arith.addf %169, %168 : vector<1x128xf32>
    %171 = arith.divf %169, %170 : vector<1x128xf32>
    %172 = vector.extract_strided_slice %154 {offsets = [0, 256], sizes = [1, 128], strides = [1, 1]} : vector<1x384xf32> to vector<1x128xf32>
    %173 = vector.extract_strided_slice %155 {offsets = [0, 256], sizes = [1, 128], strides = [1, 1]} : vector<1x384xf32> to vector<1x128xf32>
    %174 = arith.addf %173, %7 : vector<1x128xf32>
    %175 = arith.mulf %163, %174 : vector<1x128xf32>
    %176 = arith.addf %172, %175 : vector<1x128xf32>
    %177 = math.tanh %176 : vector<1x128xf32>
    %cst_34 = arith.constant 1.000000e+00 : f32
    %178 = vector.broadcast %cst_34 : f32 to vector<1x128xf32>
    %179 = arith.subf %178, %171 : vector<1x128xf32>
    %180 = arith.mulf %179, %177 : vector<1x128xf32>
    %181 = arith.mulf %171, %153 : vector<1x128xf32>
    %182 = arith.addf %180, %181 : vector<1x128xf32>
    %183 = vector.extract_strided_slice %5 {offsets = [6, 0], sizes = [1, 384], strides = [1, 1]} : vector<8x384xf32> to vector<1x384xf32>
    %cst_35 = arith.constant dense<0.000000e+00> : vector<1x384xf32>
    %184 = tpu.matmul %182, %6, %cst_35 {dimension_numbers = #tpu.dot_dimension_numbers<[1], [0], [0], [1], [0, 0, 1, 1], [], []>} : vector<1x128xf32>, vector<128x384xf32>, vector<1x384xf32> -> vector<1x384xf32>
    %185 = vector.extract_strided_slice %183 {offsets = [0, 0], sizes = [1, 128], strides = [1, 1]} : vector<1x384xf32> to vector<1x128xf32>
    %186 = vector.extract_strided_slice %184 {offsets = [0, 0], sizes = [1, 128], strides = [1, 1]} : vector<1x384xf32> to vector<1x128xf32>
    %187 = arith.addf %185, %186 : vector<1x128xf32>
    %188 = arith.negf %187 : vector<1x128xf32>
    %189 = math.exp %188 : vector<1x128xf32>
    %cst_36 = arith.constant 1.000000e+00 : f32
    %190 = vector.broadcast %cst_36 : f32 to vector<1x128xf32>
    %191 = arith.addf %190, %189 : vector<1x128xf32>
    %192 = arith.divf %190, %191 : vector<1x128xf32>
    %193 = vector.extract_strided_slice %183 {offsets = [0, 128], sizes = [1, 128], strides = [1, 1]} : vector<1x384xf32> to vector<1x128xf32>
    %194 = vector.extract_strided_slice %184 {offsets = [0, 128], sizes = [1, 128], strides = [1, 1]} : vector<1x384xf32> to vector<1x128xf32>
    %195 = arith.addf %193, %194 : vector<1x128xf32>
    %196 = arith.negf %195 : vector<1x128xf32>
    %197 = math.exp %196 : vector<1x128xf32>
    %cst_37 = arith.constant 1.000000e+00 : f32
    %198 = vector.broadcast %cst_37 : f32 to vector<1x128xf32>
    %199 = arith.addf %198, %197 : vector<1x128xf32>
    %200 = arith.divf %198, %199 : vector<1x128xf32>
    %201 = vector.extract_strided_slice %183 {offsets = [0, 256], sizes = [1, 128], strides = [1, 1]} : vector<1x384xf32> to vector<1x128xf32>
    %202 = vector.extract_strided_slice %184 {offsets = [0, 256], sizes = [1, 128], strides = [1, 1]} : vector<1x384xf32> to vector<1x128xf32>
    %203 = arith.addf %202, %7 : vector<1x128xf32>
    %204 = arith.mulf %192, %203 : vector<1x128xf32>
    %205 = arith.addf %201, %204 : vector<1x128xf32>
    %206 = math.tanh %205 : vector<1x128xf32>
    %cst_38 = arith.constant 1.000000e+00 : f32
    %207 = vector.broadcast %cst_38 : f32 to vector<1x128xf32>
    %208 = arith.subf %207, %200 : vector<1x128xf32>
    %209 = arith.mulf %208, %206 : vector<1x128xf32>
    %210 = arith.mulf %200, %182 : vector<1x128xf32>
    %211 = arith.addf %209, %210 : vector<1x128xf32>
    %212 = vector.extract_strided_slice %5 {offsets = [7, 0], sizes = [1, 384], strides = [1, 1]} : vector<8x384xf32> to vector<1x384xf32>
    %cst_39 = arith.constant dense<0.000000e+00> : vector<1x384xf32>
    %213 = tpu.matmul %211, %6, %cst_39 {dimension_numbers = #tpu.dot_dimension_numbers<[1], [0], [0], [1], [0, 0, 1, 1], [], []>} : vector<1x128xf32>, vector<128x384xf32>, vector<1x384xf32> -> vector<1x384xf32>
    %214 = vector.extract_strided_slice %212 {offsets = [0, 0], sizes = [1, 128], strides = [1, 1]} : vector<1x384xf32> to vector<1x128xf32>
    %215 = vector.extract_strided_slice %213 {offsets = [0, 0], sizes = [1, 128], strides = [1, 1]} : vector<1x384xf32> to vector<1x128xf32>
    %216 = arith.addf %214, %215 : vector<1x128xf32>
    %217 = arith.negf %216 : vector<1x128xf32>
    %218 = math.exp %217 : vector<1x128xf32>
    %cst_40 = arith.constant 1.000000e+00 : f32
    %219 = vector.broadcast %cst_40 : f32 to vector<1x128xf32>
    %220 = arith.addf %219, %218 : vector<1x128xf32>
    %221 = arith.divf %219, %220 : vector<1x128xf32>
    %222 = vector.extract_strided_slice %212 {offsets = [0, 128], sizes = [1, 128], strides = [1, 1]} : vector<1x384xf32> to vector<1x128xf32>
    %223 = vector.extract_strided_slice %213 {offsets = [0, 128], sizes = [1, 128], strides = [1, 1]} : vector<1x384xf32> to vector<1x128xf32>
    %224 = arith.addf %222, %223 : vector<1x128xf32>
    %225 = arith.negf %224 : vector<1x128xf32>
    %226 = math.exp %225 : vector<1x128xf32>
    %cst_41 = arith.constant 1.000000e+00 : f32
    %227 = vector.broadcast %cst_41 : f32 to vector<1x128xf32>
    %228 = arith.addf %227, %226 : vector<1x128xf32>
    %229 = arith.divf %227, %228 : vector<1x128xf32>
    %230 = vector.extract_strided_slice %212 {offsets = [0, 256], sizes = [1, 128], strides = [1, 1]} : vector<1x384xf32> to vector<1x128xf32>
    %231 = vector.extract_strided_slice %213 {offsets = [0, 256], sizes = [1, 128], strides = [1, 1]} : vector<1x384xf32> to vector<1x128xf32>
    %232 = arith.addf %231, %7 : vector<1x128xf32>
    %233 = arith.mulf %221, %232 : vector<1x128xf32>
    %234 = arith.addf %230, %233 : vector<1x128xf32>
    %235 = math.tanh %234 : vector<1x128xf32>
    %cst_42 = arith.constant 1.000000e+00 : f32
    %236 = vector.broadcast %cst_42 : f32 to vector<1x128xf32>
    %237 = arith.subf %236, %229 : vector<1x128xf32>
    %238 = arith.mulf %237, %235 : vector<1x128xf32>
    %239 = arith.mulf %229, %211 : vector<1x128xf32>
    %240 = arith.addf %238, %239 : vector<1x128xf32>
    %c0_43 = arith.constant 0 : index
    %c0_44 = arith.constant 0 : index
    %241 = vector.load %arg6[%c0_43, %c0_44] : memref<128x128xf32, #tpu.memory_space<vmem>>, vector<128x128xf32>
    %cst_45 = arith.constant dense<0.000000e+00> : vector<1x128xf32>
    %242 = tpu.matmul %240, %241, %cst_45 {dimension_numbers = #tpu.dot_dimension_numbers<[1], [0], [0], [1], [0, 0, 1, 1], [], []>} : vector<1x128xf32>, vector<128x128xf32>, vector<1x128xf32> -> vector<1x128xf32>
    %c0_46 = arith.constant 0 : index
    %c0_47 = arith.constant 0 : index
    %243 = vector.load %arg7[%c0_46, %c0_47] : memref<1x128xf32, #tpu.memory_space<vmem>>, vector<1x128xf32>
    %244 = arith.addf %242, %243 : vector<1x128xf32>
    %cst_48 = arith.constant dense<0xFF800000> : vector<1xf32>
    %245 = vector.multi_reduction <maximumf>, %244, %cst_48 [1] : vector<1x128xf32> to vector<1xf32>
    %246 = vector.shape_cast %245 : vector<1xf32> to vector<1x1xf32>
    %247 = vector.broadcast %246 : vector<1x1xf32> to vector<1x128xf32>
    %248 = arith.subf %244, %247 : vector<1x128xf32>
    %249 = math.exp %248 : vector<1x128xf32>
    %cst_49 = arith.constant dense<0.000000e+00> : vector<1xf32>
    %250 = vector.multi_reduction <add>, %249, %cst_49 [1] : vector<1x128xf32> to vector<1xf32>
    %251 = vector.shape_cast %250 : vector<1xf32> to vector<1x1xf32>
    %252 = math.log %251 : vector<1x1xf32>
    %253 = arith.addf %246, %252 : vector<1x1xf32>
    %254 = vector.broadcast %253 : vector<1x1xf32> to vector<1x128xf32>
    %255 = arith.subf %244, %254 : vector<1x128xf32>
    %c0_50 = arith.constant 0 : index
    %c0_51 = arith.constant 0 : index
    %256 = vector.load %arg8[%c0_50, %c0_51] : memref<1x128xf32, #tpu.memory_space<vmem>>, vector<1x128xf32>
    tpu.vector_store %arg8[%c0_50, %c0_51], %255 {strides = array<i32>} : memref<1x128xf32, #tpu.memory_space<vmem>>, vector<1x128xf32>,
    return
  }
}

</mosaic_0001>

<llo_original>
// kernel: tpu_custom_call.1
$region0: #{tpu_custom_call.1}
  #allocation0 [shape = 'u32[]', space=smem, size = 0x4, offset = 0x4, fixed_abs, tag = 'smem constant byte address 0x4 - core index']
  #allocation1 [shape = 'u32[72,128]{1,0:T(1,128)}', space=vmem, size = 0x9000, scoped, tag = 'internal scratch']
  %s0 = inlined_call_operand.hbm [shape: f32[8,128], index: 0, kind: input, shape index: {}]
  %s1 = inlined_call_operand.hbm [shape: f32[1,128], index: 1, kind: input, shape index: {}]
  %s2 = inlined_call_operand.hbm [shape: f32[128,384], index: 2, kind: input, shape index: {}]
  %s3 = inlined_call_operand.hbm [shape: f32[128,384], index: 3, kind: input, shape index: {}]
  %s4 = inlined_call_operand.vmem [shape: f32[1,384], index: 4, kind: input, shape index: {}]
  %s5 = inlined_call_operand.vmem [shape: f32[1,128], index: 5, kind: input, shape index: {}]
  %s6 = inlined_call_operand.hbm [shape: f32[128,128], index: 6, kind: input, shape index: {}]
  %s7 = inlined_call_operand.vmem [shape: f32[1,128], index: 7, kind: input, shape index: {}]
  %s8 = inlined_call_operand.hbm [shape: f32[1,128], index: 8, kind: output, shape index: {}]
  %s9 = sld [smem:[#allocation0]]
  $region62: #{tpu_custom_call.1} parent=0
    _
  %s11 = ssub.s32 1, %s9
  %s12 = scalar_select 0, %s11, %s9
  $region1: #{tpu_custom_call.1} parent=0
    #allocation2 [shape = 'u8[4096]{0}', space=vmem, size = 0x1000, scoped, tag = 'input window, operand 0, single buffered']
    #allocation3 [shape = 's32[1]{0}', space=sflag, size = 0x4, scoped, tag = 'scoped memory for tpu_custom_call.1']
    #allocation4 [shape = 's32[1]{0}', space=sflag, size = 0x4, scoped, tag = 'scoped memory for tpu_custom_call.1']
    #allocation5 [shape = 'u8[512]{0}', space=vmem, size = 0x400, scoped, tag = 'input window, operand 1, single buffered']
    #allocation6 [shape = 's32[1]{0}', space=sflag, size = 0x4, scoped, tag = 'scoped memory for tpu_custom_call.1']
    #allocation7 [shape = 'u8[196608]{0}', space=vmem, size = 0x30000, scoped, tag = 'input window, operand 2, single buffered']
    #allocation8 [shape = 'u8[196608]{0}', space=vmem, size = 0x30000, scoped, tag = 'input window, operand 3, single buffered']
    #allocation9 [shape = 's32[1]{0}', space=sflag, size = 0x4, scoped, tag = 'scoped memory for tpu_custom_call.1']
    #allocation10 [shape = 'u8[65536]{0}', space=vmem, size = 0x10000, scoped, tag = 'input window, operand 6, single buffered']
    #allocation11 [shape = 'u8[512]{0}', space=vmem, size = 0x400, scoped, tag = 'output window, operand 0, single buffered']
    %13 = vsyncpa [#allocation3], 0
    %14 = vsyncpa [#allocation6], 0
    %15 = vsyncpa [#allocation9], 0
    %16 = vsyncpa [#allocation4], 0
    // Predicated region
    $region2: #{tpu_custom_call.1} parent=1 // pred_check
      _
    $region3: #{tpu_custom_call.1} parent=1 // pred_check_branch
      %18 = sbr.rel (0) target = $region5
    $region4: #{tpu_custom_call.1} parent=1 // pred_region
      %20 = vsyncadd [#allocation3], 0
      %s22 = sshll.u32 %s0, 4
      %s23 = int_to_ptr.hbm [resolvable:$true] %s22
      %s24 = sshll.u32 [#allocation2], 4
      %s25 = int_to_ptr.vmem [resolvable:$true] %s24
      %27 = dma.hbm_to_vmem [thread:$0]  %s23, 128, %s25, [#allocation3]
    $region5: #{tpu_custom_call.1} parent=1 // pred_fallthru
      _
    // Predicated region
    $region6: #{tpu_custom_call.1} parent=1 // pred_check
      _
    $region7: #{tpu_custom_call.1} parent=1 // pred_check_branch
      %29 = sbr.rel (0) target = $region9
    $region8: #{tpu_custom_call.1} parent=1 // pred_region
      %31 = vsyncadd [#allocation6], 0
      %s33 = sshll.u32 %s1, 4
      %s34 = int_to_ptr.hbm [resolvable:$true] %s33
      %s35 = sshll.u32 [#allocation5], 4
      %s36 = int_to_ptr.vmem [resolvable:$true] %s35
      %38 = dma.hbm_to_vmem [thread:$0]  %s34, 16, %s36, [#allocation6]
    $region9: #{tpu_custom_call.1} parent=1 // pred_fallthru
      _
    // Predicated region
    $region10: #{tpu_custom_call.1} parent=1 // pred_check
      _
    $region11: #{tpu_custom_call.1} parent=1 // pred_check_branch
      %40 = sbr.rel (0) target = $region13
    $region12: #{tpu_custom_call.1} parent=1 // pred_region
      %42 = vsyncadd [#allocation6], 0
      %s43 = sshll.u32 %s2, 4
      %s44 = int_to_ptr.hbm [resolvable:$true] %s43
      %s45 = sshll.u32 [#allocation7], 4
      %s46 = int_to_ptr.vmem [resolvable:$true] %s45
      %51 = dma.hbm_to_vmem [thread:$0]  %s44, 6144, %s46, [#allocation6], 384, 384, 24
    $region13: #{tpu_custom_call.1} parent=1 // pred_fallthru
      _
    // Predicated region
    $region14: #{tpu_custom_call.1} parent=1 // pred_check
      _
    $region15: #{tpu_custom_call.1} parent=1 // pred_check_branch
      %53 = sbr.rel (0) target = $region17
    $region16: #{tpu_custom_call.1} parent=1 // pred_region
      %55 = vsyncadd [#allocation9], 0
      %s56 = sshll.u32 %s3, 4
      %s57 = int_to_ptr.hbm [resolvable:$true] %s56
      %s58 = sshll.u32 [#allocation8], 4
      %s59 = int_to_ptr.vmem [resolvable:$true] %s58
      %64 = dma.hbm_to_vmem [thread:$0]  %s57, 6144, %s59, [#allocation9], 384, 384, 24
    $region17: #{tpu_custom_call.1} parent=1 // pred_fallthru
      _
    // Predicated region
    $region18: #{tpu_custom_call.1} parent=1 // pred_check
      _
    $region19: #{tpu_custom_call.1} parent=1 // pred_check_branch
      %66 = sbr.rel (0) target = $region21
    $region20: #{tpu_custom_call.1} parent=1 // pred_region
      _
    $region21: #{tpu_custom_call.1} parent=1 // pred_fallthru
      _
    // Predicated region
    $region22: #{tpu_custom_call.1} parent=1 // pred_check
      _
    $region23: #{tpu_custom_call.1} parent=1 // pred_check_branch
      %68 = sbr.rel (0) target = $region25
    $region24: #{tpu_custom_call.1} parent=1 // pred_region
      _
    $region25: #{tpu_custom_call.1} parent=1 // pred_fallthru
      _
    // Predicated region
    $region26: #{tpu_custom_call.1} parent=1 // pred_check
      _
    $region27: #{tpu_custom_call.1} parent=1 // pred_check_branch
      %70 = sbr.rel (0) target = $region29
    $region28: #{tpu_custom_call.1} parent=1 // pred_region
      %72 = vsyncadd [#allocation9], 0
      %s73 = sshll.u32 %s6, 4
      %s74 = int_to_ptr.hbm [resolvable:$true] %s73
      %s75 = sshll.u32 [#allocation10], 4
      %s76 = int_to_ptr.vmem [resolvable:$true] %s75
      %81 = dma.hbm_to_vmem [thread:$0]  %s74, 2048, %s76, [#allocation9], 128, 128, 8
    $region29: #{tpu_custom_call.1} parent=1 // pred_fallthru
      _
    // Predicated region
    $region30: #{tpu_custom_call.1} parent=1 // pred_check
      _
    $region31: #{tpu_custom_call.1} parent=1 // pred_check_branch
      %83 = sbr.rel (0) target = $region33
    $region32: #{tpu_custom_call.1} parent=1 // pred_region
      _
    $region33: #{tpu_custom_call.1} parent=1 // pred_fallthru
      _
    // Predicated region
    $region34: #{tpu_custom_call.1} parent=1 // pred_check
      _
    $region35: #{tpu_custom_call.1} parent=1 // pred_check_branch
      %85 = sbr.rel (0) target = $region37
    $region36: #{tpu_custom_call.1} parent=1 // pred_region
      %87 = dma.done [#allocation3], 128
    $region37: #{tpu_custom_call.1} parent=1 // pred_fallthru
      _
    // Predicated region
    $region38: #{tpu_custom_call.1} parent=1 // pred_check
      _
    $region39: #{tpu_custom_call.1} parent=1 // pred_check_branch
      %89 = sbr.rel (0) target = $region41
    $region40: #{tpu_custom_call.1} parent=1 // pred_region
      %91 = dma.done [#allocation6], 16
    $region41: #{tpu_custom_call.1} parent=1 // pred_fallthru
      _
    // Predicated region
    $region42: #{tpu_custom_call.1} parent=1 // pred_check
      _
    $region43: #{tpu_custom_call.1} parent=1 // pred_check_branch
      %93 = sbr.rel (0) target = $region45
    $region44: #{tpu_custom_call.1} parent=1 // pred_region
      %95 = dma.done [#allocation6], 6144
    $region45: #{tpu_custom_call.1} parent=1 // pred_fallthru
      _
    // Predicated region
    $region46: #{tpu_custom_call.1} parent=1 // pred_check
      _
    $region47: #{tpu_custom_call.1} parent=1 // pred_check_branch
      %97 = sbr.rel (0) target = $region49
    $region48: #{tpu_custom_call.1} parent=1 // pred_region
      %99 = dma.done [#allocation9], 6144
    $region49: #{tpu_custom_call.1} parent=1 // pred_fallthru
      _
    // Predicated region
    $region50: #{tpu_custom_call.1} parent=1 // pred_check
      _
    $region51: #{tpu_custom_call.1} parent=1 // pred_check_branch
      %101 = sbr.rel (0) target = $region53
    $region52: #{tpu_custom_call.1} parent=1 // pred_region
      %103 = dma.done [#allocation9], 2048
    $region53: #{tpu_custom_call.1} parent=1 // pred_fallthru
      _
    %v104 = vld [vmem:[#allocation2] sm:$0xff]
    %v105 = vld [vmem:[#allocation7] sm:$0xff]
    %v106 = vld [vmem:[#allocation7 + $0x8] sm:$0xff]
    %v107 = vld [vmem:[#allocation7 + $0x10] sm:$0xff]
    %v108 = vld [vmem:[#allocation7 + $0x18] sm:$0xff]
    %v109 = vld [vmem:[#allocation7 + $0x20] sm:$0xff]
    %v110 = vld [vmem:[#allocation7 + $0x28] sm:$0xff]
    %v111 = vld [vmem:[#allocation7 + $0x30] sm:$0xff]
    %v112 = vld [vmem:[#allocation7 + $0x38] sm:$0xff]
    %v113 = vld [vmem:[#allocation7 + $0x40] sm:$0xff]
    %v114 = vld [vmem:[#allocation7 + $0x48] sm:$0xff]
    %v115 = vld [vmem:[#allocation7 + $0x50] sm:$0xff]
    %v116 = vld [vmem:[#allocation7 + $0x58] sm:$0xff]
    %v117 = vld [vmem:[#allocation7 + $0x60] sm:$0xff]
    %v118 = vld [vmem:[#allocation7 + $0x68] sm:$0xff]
    %v119 = vld [vmem:[#allocation7 + $0x70] sm:$0xff]
    %v120 = vld [vmem:[#allocation7 + $0x78] sm:$0xff]
    %v121 = vld [vmem:[#allocation7 + $0x80] sm:$0xff]
    %v122 = vld [vmem:[#allocation7 + $0x88] sm:$0xff]
    %v123 = vld [vmem:[#allocation7 + $0x90] sm:$0xff]
    %v124 = vld [vmem:[#allocation7 + $0x98] sm:$0xff]
    %v125 = vld [vmem:[#allocation7 + $0xa0] sm:$0xff]
    %v126 = vld [vmem:[#allocation7 + $0xa8] sm:$0xff]
    %v127 = vld [vmem:[#allocation7 + $0xb0] sm:$0xff]
    %v128 = vld [vmem:[#allocation7 + $0xb8] sm:$0xff]
    %v129 = vld [vmem:[#allocation7 + $0xc0] sm:$0xff]
    %v130 = vld [vmem:[#allocation7 + $0xc8] sm:$0xff]
    %v131 = vld [vmem:[#allocation7 + $0xd0] sm:$0xff]
    %v132 = vld [vmem:[#allocation7 + $0xd8] sm:$0xff]
    %v133 = vld [vmem:[#allocation7 + $0xe0] sm:$0xff]
    %v134 = vld [vmem:[#allocation7 + $0xe8] sm:$0xff]
    %v135 = vld [vmem:[#allocation7 + $0xf0] sm:$0xff]
    %v136 = vld [vmem:[#allocation7 + $0xf8] sm:$0xff]
    %v137 = vld [vmem:[#allocation7 + $0x100] sm:$0xff]
    %v138 = vld [vmem:[#allocation7 + $0x108] sm:$0xff]
    %v139 = vld [vmem:[#allocation7 + $0x110] sm:$0xff]
    %v140 = vld [vmem:[#allocation7 + $0x118] sm:$0xff]
    %v141 = vld [vmem:[#allocation7 + $0x120] sm:$0xff]
    %v142 = vld [vmem:[#allocation7 + $0x128] sm:$0xff]
    %v143 = vld [vmem:[#allocation7 + $0x130] sm:$0xff]
    %v144 = vld [vmem:[#allocation7 + $0x138] sm:$0xff]
    %v145 = vld [vmem:[#allocation7 + $0x140] sm:$0xff]
    %v146 = vld [vmem:[#allocation7 + $0x148] sm:$0xff]
    %v147 = vld [vmem:[#allocation7 + $0x150] sm:$0xff]
    %v148 = vld [vmem:[#allocation7 + $0x158] sm:$0xff]
    %v149 = vld [vmem:[#allocation7 + $0x160] sm:$0xff]
    %v150 = vld [vmem:[#allocation7 + $0x168] sm:$0xff]
    %v151 = vld [vmem:[#allocation7 + $0x170] sm:$0xff]
    %v152 = vld [vmem:[#allocation7 + $0x178] sm:$0xff]
    %v153 = vld [vmem:[%s4] sm:$0x7]
    %v155 = vperm.slane %v153, 0
    %v156 = vperm.slane %v153, 1
    %v157 = vperm.slane %v153, 2
    %161 = vmatpush.msra.mxu0 %v150
    %162 = vmatpush.msra.mxu0 %v147
    %163 = vmatpush.msra.mxu0 %v144
    %164 = vmatpush.msra.mxu0 %v141
    %165 = vmatpush.msra.mxu0 %v138
    %166 = vmatpush.msra.mxu0 %v135
    %167 = vmatpush.msra.mxu0 %v132
    %168 = vmatpush.msra.mxu0 %v129
    %169 = vmatpush.msra.mxu0 %v126
    %170 = vmatpush.msra.mxu0 %v123
    %171 = vmatpush.msra.mxu0 %v120
    %172 = vmatpush.msra.mxu0 %v117
    %173 = vmatpush.msra.mxu0 %v114
    %174 = vmatpush.msra.mxu0 %v111
    %175 = vmatpush.msra.mxu0 %v108
    %176 = vmatpush.msra.mxu0 %v105
    %177 = vmatmul.f32.gmra.mxu0 %v104
    %v178 = vpop.f32.mrf.mxu0
    %v179 = vadd.f32 %v155, %v178
    %180 = vdwg.mxu0
    %181 = vmatpush.msra.mxu0 %v151
    %182 = vmatpush.msra.mxu0 %v148
    %183 = vmatpush.msra.mxu0 %v145
    %184 = vmatpush.msra.mxu0 %v142
    %185 = vmatpush.msra.mxu0 %v139
    %186 = vmatpush.msra.mxu0 %v136
    %187 = vmatpush.msra.mxu0 %v133
    %188 = vmatpush.msra.mxu0 %v130
    %189 = vmatpush.msra.mxu0 %v127
    %190 = vmatpush.msra.mxu0 %v124
    %191 = vmatpush.msra.mxu0 %v121
    %192 = vmatpush.msra.mxu0 %v118
    %193 = vmatpush.msra.mxu0 %v115
    %194 = vmatpush.msra.mxu0 %v112
    %195 = vmatpush.msra.mxu0 %v109
    %196 = vmatpush.msra.mxu0 %v106
    %197 = vmatmul.f32.gmra.mxu0 %v104
    %v198 = vpop.f32.mrf.mxu0
    %v199 = vadd.f32 %v156, %v198
    %200 = vdwg.mxu0
    %201 = vmatpush.msra.mxu0 %v152
    %202 = vmatpush.msra.mxu0 %v149
    %203 = vmatpush.msra.mxu0 %v146
    %204 = vmatpush.msra.mxu0 %v143
    %205 = vmatpush.msra.mxu0 %v140
    %206 = vmatpush.msra.mxu0 %v137
    %207 = vmatpush.msra.mxu0 %v134
    %208 = vmatpush.msra.mxu0 %v131
    %209 = vmatpush.msra.mxu0 %v128
    %210 = vmatpush.msra.mxu0 %v125
    %211 = vmatpush.msra.mxu0 %v122
    %212 = vmatpush.msra.mxu0 %v119
    %213 = vmatpush.msra.mxu0 %v116
    %214 = vmatpush.msra.mxu0 %v113
    %215 = vmatpush.msra.mxu0 %v110
    %216 = vmatpush.msra.mxu0 %v107
    %217 = vmatmul.f32.gmra.mxu0 %v104
    %v218 = vpop.f32.mrf.mxu0
    %v219 = vadd.f32 %v157, %v218
    %220 = vdwg.mxu0
    %v221 = vld [vmem:[#allocation8] sm:$0xff]
    %v222 = vld [vmem:[#allocation8 + $0x8] sm:$0xff]
    %v223 = vld [vmem:[#allocation8 + $0x10] sm:$0xff]
    %v224 = vld [vmem:[#allocation8 + $0x18] sm:$0xff]
    %v225 = vld [vmem:[#allocation8 + $0x20] sm:$0xff]
    %v226 = vld [vmem:[#allocation8 + $0x28] sm:$0xff]
    %v227 = vld [vmem:[#allocation8 + $0x30] sm:$0xff]
    %v228 = vld [vmem:[#allocation8 + $0x38] sm:$0xff]
    %v229 = vld [vmem:[#allocation8 + $0x40] sm:$0xff]
    %v230 = vld [vmem:[#allocation8 + $0x48] sm:$0xff]
    %v231 = vld [vmem:[#allocation8 + $0x50] sm:$0xff]
    %v232 = vld [vmem:[#allocation8 + $0x58] sm:$0xff]
    %v233 = vld [vmem:[#allocation8 + $0x60] sm:$0xff]
    %v234 = vld [vmem:[#allocation8 + $0x68] sm:$0xff]
    %v235 = vld [vmem:[#allocation8 + $0x70] sm:$0xff]
    %v236 = vld [vmem:[#allocation8 + $0x78] sm:$0xff]
    %v237 = vld [vmem:[#allocation8 + $0x80] sm:$0xff]
    %v238 = vld [vmem:[#allocation8 + $0x88] sm:$0xff]
    %v239 = vld [vmem:[#allocation8 + $0x90] sm:$0xff]
    %v240 = vld [vmem:[#allocation8 + $0x98] sm:$0xff]
    %v241 = vld [vmem:[#allocation8 + $0xa0] sm:$0xff]
    %v242 = vld [vmem:[#allocation8 + $0xa8] sm:$0xff]
    %v243 = vld [vmem:[#allocation8 + $0xb0] sm:$0xff]
    %v244 = vld [vmem:[#allocation8 + $0xb8] sm:$0xff]
    %v245 = vld [vmem:[#allocation8 + $0xc0] sm:$0xff]
    %v246 = vld [vmem:[#allocation8 + $0xc8] sm:$0xff]
    %v247 = vld [vmem:[#allocation8 + $0xd0] sm:$0xff]
    %v248 = vld [vmem:[#allocation8 + $0xd8] sm:$0xff]
    %v249 = vld [vmem:[#allocation8 + $0xe0] sm:$0xff]
    %v250 = vld [vmem:[#allocation8 + $0xe8] sm:$0xff]
    %v251 = vld [vmem:[#allocation8 + $0xf0] sm:$0xff]
    %v252 = vld [vmem:[#allocation8 + $0xf8] sm:$0xff]
    %v253 = vld [vmem:[#allocation8 + $0x100] sm:$0xff]
    %v254 = vld [vmem:[#allocation8 + $0x108] sm:$0xff]
    %v255 = vld [vmem:[#allocation8 + $0x110] sm:$0xff]
    %v256 = vld [vmem:[#allocation8 + $0x118] sm:$0xff]
    %v257 = vld [vmem:[#allocation8 + $0x120] sm:$0xff]
    %v258 = vld [vmem:[#allocation8 + $0x128] sm:$0xff]
    %v259 = vld [vmem:[#allocation8 + $0x130] sm:$0xff]
    %v260 = vld [vmem:[#allocation8 + $0x138] sm:$0xff]
    %v261 = vld [vmem:[#allocation8 + $0x140] sm:$0xff]
    %v262 = vld [vmem:[#allocation8 + $0x148] sm:$0xff]
    %v263 = vld [vmem:[#allocation8 + $0x150] sm:$0xff]
    %v264 = vld [vmem:[#allocation8 + $0x158] sm:$0xff]
    %v265 = vld [vmem:[#allocation8 + $0x160] sm:$0xff]
    %v266 = vld [vmem:[#allocation8 + $0x168] sm:$0xff]
    %v267 = vld [vmem:[#allocation8 + $0x170] sm:$0xff]
    %v268 = vld [vmem:[#allocation8 + $0x178] sm:$0xff]
    %v269 = vld [vmem:[%s5] sm:$0x1]
    %v270 = vld [vmem:[#allocation5] sm:$0x1]
    %271 = vmatpush.msra.mxu0 %v266
    %272 = vmatpush.msra.mxu0 %v263
    %273 = vmatpush.msra.mxu0 %v260
    %274 = vmatpush.msra.mxu0 %v257
    %275 = vmatpush.msra.mxu0 %v254
    %276 = vmatpush.msra.mxu0 %v251
    %277 = vmatpush.msra.mxu0 %v248
    %278 = vmatpush.msra.mxu0 %v245
    %279 = vmatpush.msra.mxu0 %v242
    %280 = vmatpush.msra.mxu0 %v239
    %281 = vmatpush.msra.mxu0 %v236
    %282 = vmatpush.msra.mxu0 %v233
    %283 = vmatpush.msra.mxu0 %v230
    %284 = vmatpush.msra.mxu0 %v227
    %285 = vmatpush.msra.mxu0 %v224
    %286 = vmatpush.msra.mxu0 %v221
    %287 = vmatmul.f32.gmra.mxu0 %v270
    %v288 = vpop.f32.mrf.mxu0
    %v289 = vadd.f32 0.0, %v288
    %290 = vdwg.mxu0
    %291 = vmatpush.msra.mxu0 %v267
    %292 = vmatpush.msra.mxu0 %v264
    %293 = vmatpush.msra.mxu0 %v261
    %294 = vmatpush.msra.mxu0 %v258
    %295 = vmatpush.msra.mxu0 %v255
    %296 = vmatpush.msra.mxu0 %v252
    %297 = vmatpush.msra.mxu0 %v249
    %298 = vmatpush.msra.mxu0 %v246
    %299 = vmatpush.msra.mxu0 %v243
    %300 = vmatpush.msra.mxu0 %v240
    %301 = vmatpush.msra.mxu0 %v237
    %302 = vmatpush.msra.mxu0 %v234
    %303 = vmatpush.msra.mxu0 %v231
    %304 = vmatpush.msra.mxu0 %v228
    %305 = vmatpush.msra.mxu0 %v225
    %306 = vmatpush.msra.mxu0 %v222
    %307 = vmatmul.f32.gmra.mxu0 %v270
    %v308 = vpop.f32.mrf.mxu0
    %v309 = vadd.f32 0.0, %v308
    %310 = vdwg.mxu0
    %311 = vmatpush.msra.mxu0 %v268
    %312 = vmatpush.msra.mxu0 %v265
    %313 = vmatpush.msra.mxu0 %v262
    %314 = vmatpush.msra.mxu0 %v259
    %315 = vmatpush.msra.mxu0 %v256
    %316 = vmatpush.msra.mxu0 %v253
    %317 = vmatpush.msra.mxu0 %v250
    %318 = vmatpush.msra.mxu0 %v247
    %319 = vmatpush.msra.mxu0 %v244
    %320 = vmatpush.msra.mxu0 %v241
    %321 = vmatpush.msra.mxu0 %v238
    %322 = vmatpush.msra.mxu0 %v235
    %323 = vmatpush.msra.mxu0 %v232
    %324 = vmatpush.msra.mxu0 %v229
    %325 = vmatpush.msra.mxu0 %v226
    %326 = vmatpush.msra.mxu0 %v223
    %327 = vmatmul.f32.gmra.mxu0 %v270
    %v328 = vpop.f32.mrf.mxu0
    %v329 = vadd.f32 0.0, %v328
    %330 = vdwg.mxu0
    %v331 = vadd.f32 %v179, %v289
    %v332 = vxor.u32 %v331, 2147483648
    %v333 = vmul.f32 %v332, 1.442695
    %v334 = vpow.pop %v333
    %v335 = vadd.f32 %v334, 1.0
    %v336 = vrcp.pop %v335
    %v337 = vmul.f32 %v335, %v336
    %v338 = vsub.f32 1.0, %v337
    %v339 = vmul.f32 %v336, %v338
    %v340 = vadd.f32 %v336, %v339
    %vm341 = vweird.f32 %v335
    %vm342 = vweird.f32 %v336
    %vm343 = vmor %vm341, %vm342
    %v344 = vsel %vm343, %v336, %v340
    %v345 = vand.u32 2147483647, %v335
    %vm346 = vcmp.eq.f32.partialorder %v345, 8.507059e+37
    %v347 = vand.u32 %v335, 2147483648
    %v348 = vor.u32 1.1754944e-38, %v347
    %v349 = vsel %vm346, %v348, %v344
    %v350 = vmul.f32 1.0, %v349
    %v351 = vadd.f32 %v199, %v309
    %v352 = vxor.u32 %v351, 2147483648
    %v353 = vmul.f32 %v352, 1.442695
    %v354 = vpow.pop %v353
    %v355 = vadd.f32 %v354, 1.0
    %v356 = vrcp.pop %v355
    %v357 = vmul.f32 %v355, %v356
    %v358 = vsub.f32 1.0, %v357
    %v359 = vmul.f32 %v356, %v358
    %v360 = vadd.f32 %v356, %v359
    %vm361 = vweird.f32 %v355
    %vm362 = vweird.f32 %v356
    %vm363 = vmor %vm361, %vm362
    %v364 = vsel %vm363, %v356, %v360
    %v365 = vand.u32 2147483647, %v355
    %vm366 = vcmp.eq.f32.partialorder %v365, 8.507059e+37
    %v367 = vand.u32 %v355, 2147483648
    %v368 = vor.u32 1.1754944e-38, %v367
    %v369 = vsel %vm366, %v368, %v364
    %v370 = vmul.f32 1.0, %v369
    %v371 = vadd.f32 %v329, %v269
    %v372 = vmul.f32 %v350, %v371
    %v373 = vadd.f32 %v219, %v372
    %v374 = vtanh.pop %v373
    %v375 = vsub.f32 1.0, %v370
    %v376 = vmul.f32 %v375, %v374
    %v377 = vmul.f32 %v370, %v270
    %v378 = vadd.f32 %v376, %v377
    %379 = vmatpush.msra.mxu0 %v266
    %380 = vmatpush.msra.mxu0 %v263
    %381 = vmatpush.msra.mxu0 %v260
    %382 = vmatpush.msra.mxu0 %v257
    %383 = vmatpush.msra.mxu0 %v254
    %384 = vmatpush.msra.mxu0 %v251
    %385 = vmatpush.msra.mxu0 %v248
    %386 = vmatpush.msra.mxu0 %v245
    %387 = vmatpush.msra.mxu0 %v242
    %388 = vmatpush.msra.mxu0 %v239
    %389 = vmatpush.msra.mxu0 %v236
    %390 = vmatpush.msra.mxu0 %v233
    %391 = vmatpush.msra.mxu0 %v230
    %392 = vmatpush.msra.mxu0 %v227
    %393 = vmatpush.msra.mxu0 %v224
    %394 = vmatpush.msra.mxu0 %v221
    %395 = vmatmul.f32.gmra.mxu0 %v378
    %v396 = vpop.f32.mrf.mxu0
    %v397 = vadd.f32 0.0, %v396
    %398 = vdwg.mxu0
    %399 = vmatpush.msra.mxu0 %v267
    %400 = vmatpush.msra.mxu0 %v264
    %401 = vmatpush.msra.mxu0 %v261
    %402 = vmatpush.msra.mxu0 %v258
    %403 = vmatpush.msra.mxu0 %v255
    %404 = vmatpush.msra.mxu0 %v252
    %405 = vmatpush.msra.mxu0 %v249
    %406 = vmatpush.msra.mxu0 %v246
    %407 = vmatpush.msra.mxu0 %v243
    %408 = vmatpush.msra.mxu0 %v240
    %409 = vmatpush.msra.mxu0 %v237
    %410 = vmatpush.msra.mxu0 %v234
    %411 = vmatpush.msra.mxu0 %v231
    %412 = vmatpush.msra.mxu0 %v228
    %413 = vmatpush.msra.mxu0 %v225
    %414 = vmatpush.msra.mxu0 %v222
    %415 = vmatmul.f32.gmra.mxu0 %v378
    %v416 = vpop.f32.mrf.mxu0
    %v417 = vadd.f32 0.0, %v416
    %418 = vdwg.mxu0
    %419 = vmatpush.msra.mxu0 %v268
    %420 = vmatpush.msra.mxu0 %v265
    %421 = vmatpush.msra.mxu0 %v262
    %422 = vmatpush.msra.mxu0 %v259
    %423 = vmatpush.msra.mxu0 %v256
    %424 = vmatpush.msra.mxu0 %v253
    %425 = vmatpush.msra.mxu0 %v250
    %426 = vmatpush.msra.mxu0 %v247
    %427 = vmatpush.msra.mxu0 %v244
    %428 = vmatpush.msra.mxu0 %v241
    %429 = vmatpush.msra.mxu0 %v238
    %430 = vmatpush.msra.mxu0 %v235
    %431 = vmatpush.msra.mxu0 %v232
    %432 = vmatpush.msra.mxu0 %v229
    %433 = vmatpush.msra.mxu0 %v226
    %434 = vmatpush.msra.mxu0 %v223
    %435 = vmatmul.f32.gmra.mxu0 %v378
    %v436 = vpop.f32.mrf.mxu0
    %v437 = vadd.f32 0.0, %v436
    %438 = vdwg.mxu0
    %v440 = vrot.slane %v397, 7
    %v442 = vadd.f32 %v179, %v440
    %v443 = vxor.u32 %v442, 2147483648
    %v444 = vmul.f32 %v443, 1.442695
    %v445 = vpow.pop %v444
    %v446 = vadd.f32 %v445, 1.0
    %v447 = vrcp.pop %v446
    %v448 = vmul.f32 %v446, %v447
    %v449 = vsub.f32 1.0, %v448
    %v450 = vmul.f32 %v447, %v449
    %v451 = vadd.f32 %v447, %v450
    %vm452 = vweird.f32 %v446
    %vm453 = vweird.f32 %v447
    %vm454 = vmor %vm452, %vm453
    %v455 = vsel %vm454, %v447, %v451
    %v456 = vand.u32 2147483647, %v446
    %vm457 = vcmp.eq.f32.partialorder %v456, 8.507059e+37
    %v458 = vand.u32 %v446, 2147483648
    %v459 = vor.u32 1.1754944e-38, %v458
    %v460 = vsel %vm457, %v459, %v455
    %v461 = vmul.f32 1.0, %v460
    %v463 = vrot.slane %v417, 7
    %v465 = vadd.f32 %v199, %v463
    %v466 = vxor.u32 %v465, 2147483648
    %v467 = vmul.f32 %v466, 1.442695
    %v468 = vpow.pop %v467
    %v469 = vadd.f32 %v468, 1.0
    %v470 = vrcp.pop %v469
    %v471 = vmul.f32 %v469, %v470
    %v472 = vsub.f32 1.0, %v471
    %v473 = vmul.f32 %v470, %v472
    %v474 = vadd.f32 %v470, %v473
    %vm475 = vweird.f32 %v469
    %vm476 = vweird.f32 %v470
    %vm477 = vmor %vm475, %vm476
    %v478 = vsel %vm477, %v470, %v474
    %v479 = vand.u32 2147483647, %v469
    %vm480 = vcmp.eq.f32.partialorder %v479, 8.507059e+37
    %v481 = vand.u32 %v469, 2147483648
    %v482 = vor.u32 1.1754944e-38, %v481
    %v483 = vsel %vm480, %v482, %v478
    %v484 = vmul.f32 1.0, %v483
    %v485 = vadd.f32 %v437, %v269
    %v487 = vrot.slane %v485, 7
    %v489 = vmul.f32 %v461, %v487
    %v490 = vadd.f32 %v219, %v489
    %v491 = vtanh.pop %v490
    %v492 = vsub.f32 1.0, %v484
    %v493 = vmul.f32 %v492, %v491
    %v495 = vrot.slane %v378, 7
    %v497 = vmul.f32 %v484, %v495
    %v498 = vadd.f32 %v493, %v497
    %v500 = vrot.slane %v498, 1
    %502 = vmatpush.msra.mxu0 %v266
    %503 = vmatpush.msra.mxu0 %v263
    %504 = vmatpush.msra.mxu0 %v260
    %505 = vmatpush.msra.mxu0 %v257
    %506 = vmatpush.msra.mxu0 %v254
    %507 = vmatpush.msra.mxu0 %v251
    %508 = vmatpush.msra.mxu0 %v248
    %509 = vmatpush.msra.mxu0 %v245
    %510 = vmatpush.msra.mxu0 %v242
    %511 = vmatpush.msra.mxu0 %v239
    %512 = vmatpush.msra.mxu0 %v236
    %513 = vmatpush.msra.mxu0 %v233
    %514 = vmatpush.msra.mxu0 %v230
    %515 = vmatpush.msra.mxu0 %v227
    %516 = vmatpush.msra.mxu0 %v224
    %517 = vmatpush.msra.mxu0 %v221
    %518 = vmatmul.f32.gmra.mxu0 %v500
    %v519 = vpop.f32.mrf.mxu0
    %v520 = vadd.f32 0.0, %v519
    %521 = vdwg.mxu0
    %522 = vmatpush.msra.mxu0 %v267
    %523 = vmatpush.msra.mxu0 %v264
    %524 = vmatpush.msra.mxu0 %v261
    %525 = vmatpush.msra.mxu0 %v258
    %526 = vmatpush.msra.mxu0 %v255
    %527 = vmatpush.msra.mxu0 %v252
    %528 = vmatpush.msra.mxu0 %v249
    %529 = vmatpush.msra.mxu0 %v246
    %530 = vmatpush.msra.mxu0 %v243
    %531 = vmatpush.msra.mxu0 %v240
    %532 = vmatpush.msra.mxu0 %v237
    %533 = vmatpush.msra.mxu0 %v234
    %534 = vmatpush.msra.mxu0 %v231
    %535 = vmatpush.msra.mxu0 %v228
    %536 = vmatpush.msra.mxu0 %v225
    %537 = vmatpush.msra.mxu0 %v222
    %538 = vmatmul.f32.gmra.mxu0 %v500
    %v539 = vpop.f32.mrf.mxu0
    %v540 = vadd.f32 0.0, %v539
    %541 = vdwg.mxu0
    %542 = vmatpush.msra.mxu0 %v268
    %543 = vmatpush.msra.mxu0 %v265
    %544 = vmatpush.msra.mxu0 %v262
    %545 = vmatpush.msra.mxu0 %v259
    %546 = vmatpush.msra.mxu0 %v256
    %547 = vmatpush.msra.mxu0 %v253
    %548 = vmatpush.msra.mxu0 %v250
    %549 = vmatpush.msra.mxu0 %v247
    %550 = vmatpush.msra.mxu0 %v244
    %551 = vmatpush.msra.mxu0 %v241
    %552 = vmatpush.msra.mxu0 %v238
    %553 = vmatpush.msra.mxu0 %v235
    %554 = vmatpush.msra.mxu0 %v232
    %555 = vmatpush.msra.mxu0 %v229
    %556 = vmatpush.msra.mxu0 %v226
    %557 = vmatpush.msra.mxu0 %v223
    %558 = vmatmul.f32.gmra.mxu0 %v500
    %v559 = vpop.f32.mrf.mxu0
    %v560 = vadd.f32 0.0, %v559
    %561 = vdwg.mxu0
    %v563 = vrot.slane %v520, 6
    %v565 = vadd.f32 %v179, %v563
    %v566 = vxor.u32 %v565, 2147483648
    %v567 = vmul.f32 %v566, 1.442695
    %v568 = vpow.pop %v567
    %v569 = vadd.f32 %v568, 1.0
    %v570 = vrcp.pop %v569
    %v571 = vmul.f32 %v569, %v570
    %v572 = vsub.f32 1.0, %v571
    %v573 = vmul.f32 %v570, %v572
    %v574 = vadd.f32 %v570, %v573
    %vm575 = vweird.f32 %v569
    %vm576 = vweird.f32 %v570
    %vm577 = vmor %vm575, %vm576
    %v578 = vsel %vm577, %v570, %v574
    %v579 = vand.u32 2147483647, %v569
    %vm580 = vcmp.eq.f32.partialorder %v579, 8.507059e+37
    %v581 = vand.u32 %v569, 2147483648
    %v582 = vor.u32 1.1754944e-38, %v581
    %v583 = vsel %vm580, %v582, %v578
    %v584 = vmul.f32 1.0, %v583
    %v586 = vrot.slane %v540, 6
    %v588 = vadd.f32 %v199, %v586
    %v589 = vxor.u32 %v588, 2147483648
    %v590 = vmul.f32 %v589, 1.442695
    %v591 = vpow.pop %v590
    %v592 = vadd.f32 %v591, 1.0
    %v593 = vrcp.pop %v592
    %v594 = vmul.f32 %v592, %v593
    %v595 = vsub.f32 1.0, %v594
    %v596 = vmul.f32 %v593, %v595
    %v597 = vadd.f32 %v593, %v596
    %vm598 = vweird.f32 %v592
    %vm599 = vweird.f32 %v593
    %vm600 = vmor %vm598, %vm599
    %v601 = vsel %vm600, %v593, %v597
    %v602 = vand.u32 2147483647, %v592
    %vm603 = vcmp.eq.f32.partialorder %v602, 8.507059e+37
    %v604 = vand.u32 %v592, 2147483648
    %v605 = vor.u32 1.1754944e-38, %v604
    %v606 = vsel %vm603, %v605, %v601
    %v607 = vmul.f32 1.0, %v606
    %v608 = vadd.f32 %v560, %v269
    %v610 = vrot.slane %v608, 6
    %v612 = vmul.f32 %v584, %v610
    %v613 = vadd.f32 %v219, %v612
    %v614 = vtanh.pop %v613
    %v615 = vsub.f32 1.0, %v607
    %v616 = vmul.f32 %v615, %v614
    %v617 = vrot.slane %v498, 7
    %v619 = vmul.f32 %v607, %v617
    %v620 = vadd.f32 %v616, %v619
    %v622 = vrot.slane %v620, 2
    %624 = vmatpush.msra.mxu0 %v266
    %625 = vmatpush.msra.mxu0 %v263
    %626 = vmatpush.msra.mxu0 %v260
    %627 = vmatpush.msra.mxu0 %v257
    %628 = vmatpush.msra.mxu0 %v254
    %629 = vmatpush.msra.mxu0 %v251
    %630 = vmatpush.msra.mxu0 %v248
    %631 = vmatpush.msra.mxu0 %v245
    %632 = vmatpush.msra.mxu0 %v242
    %633 = vmatpush.msra.mxu0 %v239
    %634 = vmatpush.msra.mxu0 %v236
    %635 = vmatpush.msra.mxu0 %v233
    %636 = vmatpush.msra.mxu0 %v230
    %637 = vmatpush.msra.mxu0 %v227
    %638 = vmatpush.msra.mxu0 %v224
    %639 = vmatpush.msra.mxu0 %v221
    %640 = vmatmul.f32.gmra.mxu0 %v622
    %v641 = vpop.f32.mrf.mxu0
    %v642 = vadd.f32 0.0, %v641
    %643 = vdwg.mxu0
    %644 = vmatpush.msra.mxu0 %v267
    %645 = vmatpush.msra.mxu0 %v264
    %646 = vmatpush.msra.mxu0 %v261
    %647 = vmatpush.msra.mxu0 %v258
    %648 = vmatpush.msra.mxu0 %v255
    %649 = vmatpush.msra.mxu0 %v252
    %650 = vmatpush.msra.mxu0 %v249
    %651 = vmatpush.msra.mxu0 %v246
    %652 = vmatpush.msra.mxu0 %v243
    %653 = vmatpush.msra.mxu0 %v240
    %654 = vmatpush.msra.mxu0 %v237
    %655 = vmatpush.msra.mxu0 %v234
    %656 = vmatpush.msra.mxu0 %v231
    %657 = vmatpush.msra.mxu0 %v228
    %658 = vmatpush.msra.mxu0 %v225
    %659 = vmatpush.msra.mxu0 %v222
    %660 = vmatmul.f32.gmra.mxu0 %v622
    %v661 = vpop.f32.mrf.mxu0
    %v662 = vadd.f32 0.0, %v661
    %663 = vdwg.mxu0
    %664 = vmatpush.msra.mxu0 %v268
    %665 = vmatpush.msra.mxu0 %v265
    %666 = vmatpush.msra.mxu0 %v262
    %667 = vmatpush.msra.mxu0 %v259
    %668 = vmatpush.msra.mxu0 %v256
    %669 = vmatpush.msra.mxu0 %v253
    %670 = vmatpush.msra.mxu0 %v250
    %671 = vmatpush.msra.mxu0 %v247
    %672 = vmatpush.msra.mxu0 %v244
    %673 = vmatpush.msra.mxu0 %v241
    %674 = vmatpush.msra.mxu0 %v238
    %675 = vmatpush.msra.mxu0 %v235
    %676 = vmatpush.msra.mxu0 %v232
    %677 = vmatpush.msra.mxu0 %v229
    %678 = vmatpush.msra.mxu0 %v226
    %679 = vmatpush.msra.mxu0 %v223
    %680 = vmatmul.f32.gmra.mxu0 %v622
    %v681 = vpop.f32.mrf.mxu0
    %v682 = vadd.f32 0.0, %v681
    %683 = vdwg.mxu0
    %v685 = vrot.slane %v642, 5
    %v687 = vadd.f32 %v179, %v685
    %v688 = vxor.u32 %v687, 2147483648
    %v689 = vmul.f32 %v688, 1.442695
    %v690 = vpow.pop %v689
    %v691 = vadd.f32 %v690, 1.0
    %v692 = vrcp.pop %v691
    %v693 = vmul.f32 %v691, %v692
    %v694 = vsub.f32 1.0, %v693
    %v695 = vmul.f32 %v692, %v694
    %v696 = vadd.f32 %v692, %v695
    %vm697 = vweird.f32 %v691
    %vm698 = vweird.f32 %v692
    %vm699 = vmor %vm697, %vm698
    %v700 = vsel %vm699, %v692, %v696
    %v701 = vand.u32 2147483647, %v691
    %vm702 = vcmp.eq.f32.partialorder %v701, 8.507059e+37
    %v703 = vand.u32 %v691, 2147483648
    %v704 = vor.u32 1.1754944e-38, %v703
    %v705 = vsel %vm702, %v704, %v700
    %v706 = vmul.f32 1.0, %v705
    %v708 = vrot.slane %v662, 5
    %v710 = vadd.f32 %v199, %v708
    %v711 = vxor.u32 %v710, 2147483648
    %v712 = vmul.f32 %v711, 1.442695
    %v713 = vpow.pop %v712
    %v714 = vadd.f32 %v713, 1.0
    %v715 = vrcp.pop %v714
    %v716 = vmul.f32 %v714, %v715
    %v717 = vsub.f32 1.0, %v716
    %v718 = vmul.f32 %v715, %v717
    %v719 = vadd.f32 %v715, %v718
    %vm720 = vweird.f32 %v714
    %vm721 = vweird.f32 %v715
    %vm722 = vmor %vm720, %vm721
    %v723 = vsel %vm722, %v715, %v719
    %v724 = vand.u32 2147483647, %v714
    %vm725 = vcmp.eq.f32.partialorder %v724, 8.507059e+37
    %v726 = vand.u32 %v714, 2147483648
    %v727 = vor.u32 1.1754944e-38, %v726
    %v728 = vsel %vm725, %v727, %v723
    %v729 = vmul.f32 1.0, %v728
    %v730 = vadd.f32 %v682, %v269
    %v732 = vrot.slane %v730, 5
    %v734 = vmul.f32 %v706, %v732
    %v735 = vadd.f32 %v219, %v734
    %v736 = vtanh.pop %v735
    %v737 = vsub.f32 1.0, %v729
    %v738 = vmul.f32 %v737, %v736
    %v739 = vrot.slane %v620, 7
    %v741 = vmul.f32 %v729, %v739
    %v742 = vadd.f32 %v738, %v741
    %v744 = vrot.slane %v742, 3
    %746 = vmatpush.msra.mxu0 %v266
    %747 = vmatpush.msra.mxu0 %v263
    %748 = vmatpush.msra.mxu0 %v260
    %749 = vmatpush.msra.mxu0 %v257
    %750 = vmatpush.msra.mxu0 %v254
    %751 = vmatpush.msra.mxu0 %v251
    %752 = vmatpush.msra.mxu0 %v248
    %753 = vmatpush.msra.mxu0 %v245
    %754 = vmatpush.msra.mxu0 %v242
    %755 = vmatpush.msra.mxu0 %v239
    %756 = vmatpush.msra.mxu0 %v236
    %757 = vmatpush.msra.mxu0 %v233
    %758 = vmatpush.msra.mxu0 %v230
    %759 = vmatpush.msra.mxu0 %v227
    %760 = vmatpush.msra.mxu0 %v224
    %761 = vmatpush.msra.mxu0 %v221
    %762 = vmatmul.f32.gmra.mxu0 %v744
    %v763 = vpop.f32.mrf.mxu0
    %v764 = vadd.f32 0.0, %v763
    %765 = vdwg.mxu0
    %766 = vmatpush.msra.mxu0 %v267
    %767 = vmatpush.msra.mxu0 %v264
    %768 = vmatpush.msra.mxu0 %v261
    %769 = vmatpush.msra.mxu0 %v258
    %770 = vmatpush.msra.mxu0 %v255
    %771 = vmatpush.msra.mxu0 %v252
    %772 = vmatpush.msra.mxu0 %v249
    %773 = vmatpush.msra.mxu0 %v246
    %774 = vmatpush.msra.mxu0 %v243
    %775 = vmatpush.msra.mxu0 %v240
    %776 = vmatpush.msra.mxu0 %v237
    %777 = vmatpush.msra.mxu0 %v234
    %778 = vmatpush.msra.mxu0 %v231
    %779 = vmatpush.msra.mxu0 %v228
    %780 = vmatpush.msra.mxu0 %v225
    %781 = vmatpush.msra.mxu0 %v222
    %782 = vmatmul.f32.gmra.mxu0 %v744
    %v783 = vpop.f32.mrf.mxu0
    %v784 = vadd.f32 0.0, %v783
    %785 = vdwg.mxu0
    %786 = vmatpush.msra.mxu0 %v268
    %787 = vmatpush.msra.mxu0 %v265
    %788 = vmatpush.msra.mxu0 %v262
    %789 = vmatpush.msra.mxu0 %v259
    %790 = vmatpush.msra.mxu0 %v256
    %791 = vmatpush.msra.mxu0 %v253
    %792 = vmatpush.msra.mxu0 %v250
    %793 = vmatpush.msra.mxu0 %v247
    %794 = vmatpush.msra.mxu0 %v244
    %795 = vmatpush.msra.mxu0 %v241
    %796 = vmatpush.msra.mxu0 %v238
    %797 = vmatpush.msra.mxu0 %v235
    %798 = vmatpush.msra.mxu0 %v232
    %799 = vmatpush.msra.mxu0 %v229
    %800 = vmatpush.msra.mxu0 %v226
    %801 = vmatpush.msra.mxu0 %v223
    %802 = vmatmul.f32.gmra.mxu0 %v744
    %v803 = vpop.f32.mrf.mxu0
    %v804 = vadd.f32 0.0, %v803
    %805 = vdwg.mxu0
    %v807 = vrot.slane %v764, 4
    %v809 = vadd.f32 %v179, %v807
    %v810 = vxor.u32 %v809, 2147483648
    %v811 = vmul.f32 %v810, 1.442695
    %v812 = vpow.pop %v811
    %v813 = vadd.f32 %v812, 1.0
    %v814 = vrcp.pop %v813
    %v815 = vmul.f32 %v813, %v814
    %v816 = vsub.f32 1.0, %v815
    %v817 = vmul.f32 %v814, %v816
    %v818 = vadd.f32 %v814, %v817
    %vm819 = vweird.f32 %v813
    %vm820 = vweird.f32 %v814
    %vm821 = vmor %vm819, %vm820
    %v822 = vsel %vm821, %v814, %v818
    %v823 = vand.u32 2147483647, %v813
    %vm824 = vcmp.eq.f32.partialorder %v823, 8.507059e+37
    %v825 = vand.u32 %v813, 2147483648
    %v826 = vor.u32 1.1754944e-38, %v825
    %v827 = vsel %vm824, %v826, %v822
    %v828 = vmul.f32 1.0, %v827
    %v830 = vrot.slane %v784, 4
    %v832 = vadd.f32 %v199, %v830
    %v833 = vxor.u32 %v832, 2147483648
    %v834 = vmul.f32 %v833, 1.442695
    %v835 = vpow.pop %v834
    %v836 = vadd.f32 %v835, 1.0
    %v837 = vrcp.pop %v836
    %v838 = vmul.f32 %v836, %v837
    %v839 = vsub.f32 1.0, %v838
    %v840 = vmul.f32 %v837, %v839
    %v841 = vadd.f32 %v837, %v840
    %vm842 = vweird.f32 %v836
    %vm843 = vweird.f32 %v837
    %vm844 = vmor %vm842, %vm843
    %v845 = vsel %vm844, %v837, %v841
    %v846 = vand.u32 2147483647, %v836
    %vm847 = vcmp.eq.f32.partialorder %v846, 8.507059e+37
    %v848 = vand.u32 %v836, 2147483648
    %v849 = vor.u32 1.1754944e-38, %v848
    %v850 = vsel %vm847, %v849, %v845
    %v851 = vmul.f32 1.0, %v850
    %v852 = vadd.f32 %v804, %v269
    %v854 = vrot.slane %v852, 4
    %v856 = vmul.f32 %v828, %v854
    %v857 = vadd.f32 %v219, %v856
    %v858 = vtanh.pop %v857
    %v859 = vsub.f32 1.0, %v851
    %v860 = vmul.f32 %v859, %v858
    %v861 = vrot.slane %v742, 7
    %v863 = vmul.f32 %v851, %v861
    %v864 = vadd.f32 %v860, %v863
    %v866 = vrot.slane %v864, 4
    %868 = vmatpush.msra.mxu0 %v266
    %869 = vmatpush.msra.mxu0 %v263
    %870 = vmatpush.msra.mxu0 %v260
    %871 = vmatpush.msra.mxu0 %v257
    %872 = vmatpush.msra.mxu0 %v254
    %873 = vmatpush.msra.mxu0 %v251
    %874 = vmatpush.msra.mxu0 %v248
    %875 = vmatpush.msra.mxu0 %v245
    %876 = vmatpush.msra.mxu0 %v242
    %877 = vmatpush.msra.mxu0 %v239
    %878 = vmatpush.msra.mxu0 %v236
    %879 = vmatpush.msra.mxu0 %v233
    %880 = vmatpush.msra.mxu0 %v230
    %881 = vmatpush.msra.mxu0 %v227
    %882 = vmatpush.msra.mxu0 %v224
    %883 = vmatpush.msra.mxu0 %v221
    %884 = vmatmul.f32.gmra.mxu0 %v866
    %v885 = vpop.f32.mrf.mxu0
    %v886 = vadd.f32 0.0, %v885
    %887 = vdwg.mxu0
    %888 = vmatpush.msra.mxu0 %v267
    %889 = vmatpush.msra.mxu0 %v264
    %890 = vmatpush.msra.mxu0 %v261
    %891 = vmatpush.msra.mxu0 %v258
    %892 = vmatpush.msra.mxu0 %v255
    %893 = vmatpush.msra.mxu0 %v252
    %894 = vmatpush.msra.mxu0 %v249
    %895 = vmatpush.msra.mxu0 %v246
    %896 = vmatpush.msra.mxu0 %v243
    %897 = vmatpush.msra.mxu0 %v240
    %898 = vmatpush.msra.mxu0 %v237
    %899 = vmatpush.msra.mxu0 %v234
    %900 = vmatpush.msra.mxu0 %v231
    %901 = vmatpush.msra.mxu0 %v228
    %902 = vmatpush.msra.mxu0 %v225
    %903 = vmatpush.msra.mxu0 %v222
    %904 = vmatmul.f32.gmra.mxu0 %v866
    %v905 = vpop.f32.mrf.mxu0
    %v906 = vadd.f32 0.0, %v905
    %907 = vdwg.mxu0
    %908 = vmatpush.msra.mxu0 %v268
    %909 = vmatpush.msra.mxu0 %v265
    %910 = vmatpush.msra.mxu0 %v262
    %911 = vmatpush.msra.mxu0 %v259
    %912 = vmatpush.msra.mxu0 %v256
    %913 = vmatpush.msra.mxu0 %v253
    %914 = vmatpush.msra.mxu0 %v250
    %915 = vmatpush.msra.mxu0 %v247
    %916 = vmatpush.msra.mxu0 %v244
    %917 = vmatpush.msra.mxu0 %v241
    %918 = vmatpush.msra.mxu0 %v238
    %919 = vmatpush.msra.mxu0 %v235
    %920 = vmatpush.msra.mxu0 %v232
    %921 = vmatpush.msra.mxu0 %v229
    %922 = vmatpush.msra.mxu0 %v226
    %923 = vmatpush.msra.mxu0 %v223
    %924 = vmatmul.f32.gmra.mxu0 %v866
    %v925 = vpop.f32.mrf.mxu0
    %v926 = vadd.f32 0.0, %v925
    %927 = vdwg.mxu0
    %v929 = vrot.slane %v886, 3
    %v931 = vadd.f32 %v179, %v929
    %v932 = vxor.u32 %v931, 2147483648
    %v933 = vmul.f32 %v932, 1.442695
    %v934 = vpow.pop %v933
    %v935 = vadd.f32 %v934, 1.0
    %v936 = vrcp.pop %v935
    %v937 = vmul.f32 %v935, %v936
    %v938 = vsub.f32 1.0, %v937
    %v939 = vmul.f32 %v936, %v938
    %v940 = vadd.f32 %v936, %v939
    %vm941 = vweird.f32 %v935
    %vm942 = vweird.f32 %v936
    %vm943 = vmor %vm941, %vm942
    %v944 = vsel %vm943, %v936, %v940
    %v945 = vand.u32 2147483647, %v935
    %vm946 = vcmp.eq.f32.partialorder %v945, 8.507059e+37
    %v947 = vand.u32 %v935, 2147483648
    %v948 = vor.u32 1.1754944e-38, %v947
    %v949 = vsel %vm946, %v948, %v944
    %v950 = vmul.f32 1.0, %v949
    %v952 = vrot.slane %v906, 3
    %v954 = vadd.f32 %v199, %v952
    %v955 = vxor.u32 %v954, 2147483648
    %v956 = vmul.f32 %v955, 1.442695
    %v957 = vpow.pop %v956
    %v958 = vadd.f32 %v957, 1.0
    %v959 = vrcp.pop %v958
    %v960 = vmul.f32 %v958, %v959
    %v961 = vsub.f32 1.0, %v960
    %v962 = vmul.f32 %v959, %v961
    %v963 = vadd.f32 %v959, %v962
    %vm964 = vweird.f32 %v958
    %vm965 = vweird.f32 %v959
    %vm966 = vmor %vm964, %vm965
    %v967 = vsel %vm966, %v959, %v963
    %v968 = vand.u32 2147483647, %v958
    %vm969 = vcmp.eq.f32.partialorder %v968, 8.507059e+37
    %v970 = vand.u32 %v958, 2147483648
    %v971 = vor.u32 1.1754944e-38, %v970
    %v972 = vsel %vm969, %v971, %v967
    %v973 = vmul.f32 1.0, %v972
    %v974 = vadd.f32 %v926, %v269
    %v976 = vrot.slane %v974, 3
    %v978 = vmul.f32 %v950, %v976
    %v979 = vadd.f32 %v219, %v978
    %v980 = vtanh.pop %v979
    %v981 = vsub.f32 1.0, %v973
    %v982 = vmul.f32 %v981, %v980
    %v983 = vrot.slane %v864, 7
    %v985 = vmul.f32 %v973, %v983
    %v986 = vadd.f32 %v982, %v985
    %v988 = vrot.slane %v986, 5
    %990 = vmatpush.msra.mxu0 %v266
    %991 = vmatpush.msra.mxu0 %v263
    %992 = vmatpush.msra.mxu0 %v260
    %993 = vmatpush.msra.mxu0 %v257
    %994 = vmatpush.msra.mxu0 %v254
    %995 = vmatpush.msra.mxu0 %v251
    %996 = vmatpush.msra.mxu0 %v248
    %997 = vmatpush.msra.mxu0 %v245
    %998 = vmatpush.msra.mxu0 %v242
    %999 = vmatpush.msra.mxu0 %v239
    %1000 = vmatpush.msra.mxu0 %v236
    %1001 = vmatpush.msra.mxu0 %v233
    %1002 = vmatpush.msra.mxu0 %v230
    %1003 = vmatpush.msra.mxu0 %v227
    %1004 = vmatpush.msra.mxu0 %v224
    %1005 = vmatpush.msra.mxu0 %v221
    %1006 = vmatmul.f32.gmra.mxu0 %v988
    %v1007 = vpop.f32.mrf.mxu0
    %v1008 = vadd.f32 0.0, %v1007
    %1009 = vdwg.mxu0
    %1010 = vmatpush.msra.mxu0 %v267
    %1011 = vmatpush.msra.mxu0 %v264
    %1012 = vmatpush.msra.mxu0 %v261
    %1013 = vmatpush.msra.mxu0 %v258
    %1014 = vmatpush.msra.mxu0 %v255
    %1015 = vmatpush.msra.mxu0 %v252
    %1016 = vmatpush.msra.mxu0 %v249
    %1017 = vmatpush.msra.mxu0 %v246
    %1018 = vmatpush.msra.mxu0 %v243
    %1019 = vmatpush.msra.mxu0 %v240
    %1020 = vmatpush.msra.mxu0 %v237
    %1021 = vmatpush.msra.mxu0 %v234
    %1022 = vmatpush.msra.mxu0 %v231
    %1023 = vmatpush.msra.mxu0 %v228
    %1024 = vmatpush.msra.mxu0 %v225
    %1025 = vmatpush.msra.mxu0 %v222
    %1026 = vmatmul.f32.gmra.mxu0 %v988
    %v1027 = vpop.f32.mrf.mxu0
    %v1028 = vadd.f32 0.0, %v1027
    %1029 = vdwg.mxu0
    %1030 = vmatpush.msra.mxu0 %v268
    %1031 = vmatpush.msra.mxu0 %v265
    %1032 = vmatpush.msra.mxu0 %v262
    %1033 = vmatpush.msra.mxu0 %v259
    %1034 = vmatpush.msra.mxu0 %v256
    %1035 = vmatpush.msra.mxu0 %v253
    %1036 = vmatpush.msra.mxu0 %v250
    %1037 = vmatpush.msra.mxu0 %v247
    %1038 = vmatpush.msra.mxu0 %v244
    %1039 = vmatpush.msra.mxu0 %v241
    %1040 = vmatpush.msra.mxu0 %v238
    %1041 = vmatpush.msra.mxu0 %v235
    %1042 = vmatpush.msra.mxu0 %v232
    %1043 = vmatpush.msra.mxu0 %v229
    %1044 = vmatpush.msra.mxu0 %v226
    %1045 = vmatpush.msra.mxu0 %v223
    %1046 = vmatmul.f32.gmra.mxu0 %v988
    %v1047 = vpop.f32.mrf.mxu0
    %v1048 = vadd.f32 0.0, %v1047
    %1049 = vdwg.mxu0
    %v1051 = vrot.slane %v1008, 2
    %v1053 = vadd.f32 %v179, %v1051
    %v1054 = vxor.u32 %v1053, 2147483648
    %v1055 = vmul.f32 %v1054, 1.442695
    %v1056 = vpow.pop %v1055
    %v1057 = vadd.f32 %v1056, 1.0
    %v1058 = vrcp.pop %v1057
    %v1059 = vmul.f32 %v1057, %v1058
    %v1060 = vsub.f32 1.0, %v1059
    %v1061 = vmul.f32 %v1058, %v1060
    %v1062 = vadd.f32 %v1058, %v1061
    %vm1063 = vweird.f32 %v1057
    %vm1064 = vweird.f32 %v1058
    %vm1065 = vmor %vm1063, %vm1064
    %v1066 = vsel %vm1065, %v1058, %v1062
    %v1067 = vand.u32 2147483647, %v1057
    %vm1068 = vcmp.eq.f32.partialorder %v1067, 8.507059e+37
    %v1069 = vand.u32 %v1057, 2147483648
    %v1070 = vor.u32 1.1754944e-38, %v1069
    %v1071 = vsel %vm1068, %v1070, %v1066
    %v1072 = vmul.f32 1.0, %v1071
    %v1074 = vrot.slane %v1028, 2
    %v1076 = vadd.f32 %v199, %v1074
    %v1077 = vxor.u32 %v1076, 2147483648
    %v1078 = vmul.f32 %v1077, 1.442695
    %v1079 = vpow.pop %v1078
    %v1080 = vadd.f32 %v1079, 1.0
    %v1081 = vrcp.pop %v1080
    %v1082 = vmul.f32 %v1080, %v1081
    %v1083 = vsub.f32 1.0, %v1082
    %v1084 = vmul.f32 %v1081, %v1083
    %v1085 = vadd.f32 %v1081, %v1084
    %vm1086 = vweird.f32 %v1080
    %vm1087 = vweird.f32 %v1081
    %vm1088 = vmor %vm1086, %vm1087
    %v1089 = vsel %vm1088, %v1081, %v1085
    %v1090 = vand.u32 2147483647, %v1080
    %vm1091 = vcmp.eq.f32.partialorder %v1090, 8.507059e+37
    %v1092 = vand.u32 %v1080, 2147483648
    %v1093 = vor.u32 1.1754944e-38, %v1092
    %v1094 = vsel %vm1091, %v1093, %v1089
    %v1095 = vmul.f32 1.0, %v1094
    %v1096 = vadd.f32 %v1048, %v269
    %v1098 = vrot.slane %v1096, 2
    %v1100 = vmul.f32 %v1072, %v1098
    %v1101 = vadd.f32 %v219, %v1100
    %v1102 = vtanh.pop %v1101
    %v1103 = vsub.f32 1.0, %v1095
    %v1104 = vmul.f32 %v1103, %v1102
    %v1105 = vrot.slane %v986, 7
    %v1107 = vmul.f32 %v1095, %v1105
    %v1108 = vadd.f32 %v1104, %v1107
    %v1110 = vrot.slane %v1108, 6
    %1112 = vmatpush.msra.mxu0 %v266
    %1113 = vmatpush.msra.mxu0 %v263
    %1114 = vmatpush.msra.mxu0 %v260
    %1115 = vmatpush.msra.mxu0 %v257
    %1116 = vmatpush.msra.mxu0 %v254
    %1117 = vmatpush.msra.mxu0 %v251
    %1118 = vmatpush.msra.mxu0 %v248
    %1119 = vmatpush.msra.mxu0 %v245
    %1120 = vmatpush.msra.mxu0 %v242
    %1121 = vmatpush.msra.mxu0 %v239
    %1122 = vmatpush.msra.mxu0 %v236
    %1123 = vmatpush.msra.mxu0 %v233
    %1124 = vmatpush.msra.mxu0 %v230
    %1125 = vmatpush.msra.mxu0 %v227
    %1126 = vmatpush.msra.mxu0 %v224
    %1127 = vmatpush.msra.mxu0 %v221
    %1128 = vmatmul.f32.gmra.mxu0 %v1110
    %v1129 = vpop.f32.mrf.mxu0
    %v1130 = vadd.f32 0.0, %v1129
    %1131 = vdwg.mxu0
    %1132 = vmatpush.msra.mxu0 %v267
    %1133 = vmatpush.msra.mxu0 %v264
    %1134 = vmatpush.msra.mxu0 %v261
    %1135 = vmatpush.msra.mxu0 %v258
    %1136 = vmatpush.msra.mxu0 %v255
    %1137 = vmatpush.msra.mxu0 %v252
    %1138 = vmatpush.msra.mxu0 %v249
    %1139 = vmatpush.msra.mxu0 %v246
    %1140 = vmatpush.msra.mxu0 %v243
    %1141 = vmatpush.msra.mxu0 %v240
    %1142 = vmatpush.msra.mxu0 %v237
    %1143 = vmatpush.msra.mxu0 %v234
    %1144 = vmatpush.msra.mxu0 %v231
    %1145 = vmatpush.msra.mxu0 %v228
    %1146 = vmatpush.msra.mxu0 %v225
    %1147 = vmatpush.msra.mxu0 %v222
    %1148 = vmatmul.f32.gmra.mxu0 %v1110
    %v1149 = vpop.f32.mrf.mxu0
    %v1150 = vadd.f32 0.0, %v1149
    %1151 = vdwg.mxu0
    %1152 = vmatpush.msra.mxu0 %v268
    %1153 = vmatpush.msra.mxu0 %v265
    %1154 = vmatpush.msra.mxu0 %v262
    %1155 = vmatpush.msra.mxu0 %v259
    %1156 = vmatpush.msra.mxu0 %v256
    %1157 = vmatpush.msra.mxu0 %v253
    %1158 = vmatpush.msra.mxu0 %v250
    %1159 = vmatpush.msra.mxu0 %v247
    %1160 = vmatpush.msra.mxu0 %v244
    %1161 = vmatpush.msra.mxu0 %v241
    %1162 = vmatpush.msra.mxu0 %v238
    %1163 = vmatpush.msra.mxu0 %v235
    %1164 = vmatpush.msra.mxu0 %v232
    %1165 = vmatpush.msra.mxu0 %v229
    %1166 = vmatpush.msra.mxu0 %v226
    %1167 = vmatpush.msra.mxu0 %v223
    %1168 = vmatmul.f32.gmra.mxu0 %v1110
    %v1169 = vpop.f32.mrf.mxu0
    %v1170 = vadd.f32 0.0, %v1169
    %1171 = vdwg.mxu0
    %v1173 = vrot.slane %v1130, 1
    %v1175 = vadd.f32 %v179, %v1173
    %v1176 = vxor.u32 %v1175, 2147483648
    %v1177 = vmul.f32 %v1176, 1.442695
    %v1178 = vpow.pop %v1177
    %v1179 = vadd.f32 %v1178, 1.0
    %v1180 = vrcp.pop %v1179
    %v1181 = vmul.f32 %v1179, %v1180
    %v1182 = vsub.f32 1.0, %v1181
    %v1183 = vmul.f32 %v1180, %v1182
    %v1184 = vadd.f32 %v1180, %v1183
    %vm1185 = vweird.f32 %v1179
    %vm1186 = vweird.f32 %v1180
    %vm1187 = vmor %vm1185, %vm1186
    %v1188 = vsel %vm1187, %v1180, %v1184
    %v1189 = vand.u32 2147483647, %v1179
    %vm1190 = vcmp.eq.f32.partialorder %v1189, 8.507059e+37
    %v1191 = vand.u32 %v1179, 2147483648
    %v1192 = vor.u32 1.1754944e-38, %v1191
    %v1193 = vsel %vm1190, %v1192, %v1188
    %v1194 = vmul.f32 1.0, %v1193
    %v1196 = vrot.slane %v1150, 1
    %v1198 = vadd.f32 %v199, %v1196
    %v1199 = vxor.u32 %v1198, 2147483648
    %v1200 = vmul.f32 %v1199, 1.442695
    %v1201 = vpow.pop %v1200
    %v1202 = vadd.f32 %v1201, 1.0
    %v1203 = vrcp.pop %v1202
    %v1204 = vmul.f32 %v1202, %v1203
    %v1205 = vsub.f32 1.0, %v1204
    %v1206 = vmul.f32 %v1203, %v1205
    %v1207 = vadd.f32 %v1203, %v1206
    %vm1208 = vweird.f32 %v1202
    %vm1209 = vweird.f32 %v1203
    %vm1210 = vmor %vm1208, %vm1209
    %v1211 = vsel %vm1210, %v1203, %v1207
    %v1212 = vand.u32 2147483647, %v1202
    %vm1213 = vcmp.eq.f32.partialorder %v1212, 8.507059e+37
    %v1214 = vand.u32 %v1202, 2147483648
    %v1215 = vor.u32 1.1754944e-38, %v1214
    %v1216 = vsel %vm1213, %v1215, %v1211
    %v1217 = vmul.f32 1.0, %v1216
    %v1218 = vadd.f32 %v1170, %v269
    %v1220 = vrot.slane %v1218, 1
    %v1222 = vmul.f32 %v1194, %v1220
    %v1223 = vadd.f32 %v219, %v1222
    %v1224 = vtanh.pop %v1223
    %v1225 = vsub.f32 1.0, %v1217
    %v1226 = vmul.f32 %v1225, %v1224
    %v1227 = vrot.slane %v1108, 7
    %v1229 = vmul.f32 %v1217, %v1227
    %v1230 = vadd.f32 %v1226, %v1229
    %v1231 = vld [vmem:[#allocation10] sm:$0xff]
    %v1232 = vld [vmem:[#allocation10 + $0x8] sm:$0xff]
    %v1233 = vld [vmem:[#allocation10 + $0x10] sm:$0xff]
    %v1234 = vld [vmem:[#allocation10 + $0x18] sm:$0xff]
    %v1235 = vld [vmem:[#allocation10 + $0x20] sm:$0xff]
    %v1236 = vld [vmem:[#allocation10 + $0x28] sm:$0xff]
    %v1237 = vld [vmem:[#allocation10 + $0x30] sm:$0xff]
    %v1238 = vld [vmem:[#allocation10 + $0x38] sm:$0xff]
    %v1239 = vld [vmem:[#allocation10 + $0x40] sm:$0xff]
    %v1240 = vld [vmem:[#allocation10 + $0x48] sm:$0xff]
    %v1241 = vld [vmem:[#allocation10 + $0x50] sm:$0xff]
    %v1242 = vld [vmem:[#allocation10 + $0x58] sm:$0xff]
    %v1243 = vld [vmem:[#allocation10 + $0x60] sm:$0xff]
    %v1244 = vld [vmem:[#allocation10 + $0x68] sm:$0xff]
    %v1245 = vld [vmem:[#allocation10 + $0x70] sm:$0xff]
    %v1246 = vld [vmem:[#allocation10 + $0x78] sm:$0xff]
    %v1247 = vld [vmem:[%s7] sm:$0x1]
    %v1249 = vrot.slane %v1230, 7
    %1251 = vmatpush.msra.mxu0 %v1246
    %1252 = vmatpush.msra.mxu0 %v1245
    %1253 = vmatpush.msra.mxu0 %v1244
    %1254 = vmatpush.msra.mxu0 %v1243
    %1255 = vmatpush.msra.mxu0 %v1242
    %1256 = vmatpush.msra.mxu0 %v1241
    %1257 = vmatpush.msra.mxu0 %v1240
    %1258 = vmatpush.msra.mxu0 %v1239
    %1259 = vmatpush.msra.mxu0 %v1238
    %1260 = vmatpush.msra.mxu0 %v1237
    %1261 = vmatpush.msra.mxu0 %v1236
    %1262 = vmatpush.msra.mxu0 %v1235
    %1263 = vmatpush.msra.mxu0 %v1234
    %1264 = vmatpush.msra.mxu0 %v1233
    %1265 = vmatpush.msra.mxu0 %v1232
    %1266 = vmatpush.msra.mxu0 %v1231
    %1267 = vmatmul.f32.gmra.mxu0 %v1249
    %v1268 = vpop.f32.mrf.mxu0
    %v1269 = vadd.f32 %v1247, %v1268
    %1270 = vdwg.mxu0
    %vm1271 = vcmask 1040384
    %v1272 = vsel %vm1271, %v1269, -inf
    %1273 = vmax.xlane.f32.xlu0 %v1272
    %v1274 = vpop.xlane.xlu0 %1273
    %v1275 = vsub.f32 %v1269, %v1274
    %v1276 = vmul.f32 %v1275, 1.442695
    %v1277 = vpow.pop %v1276
    %v1278 = vsel %vm1271, %v1277, 0.0
    %1279 = vadd.xlane.f32.xlu0 %v1278
    %v1280 = vpop.xlane.xlu0 %1279
    %v1281 = vlog2.pop %v1280
    %v1282 = vmul.f32 %v1281, 0.6931472
    %v1283 = vadd.f32 %v1274, %v1282
    %v1284 = vsub.f32 %v1269, %v1283
    %1285 = vst [vmem:[#allocation11] sm:$0x1] %v1284
    // Predicated region
    $region54: #{tpu_custom_call.1} parent=1 // pred_check
      _
    $region55: #{tpu_custom_call.1} parent=1 // pred_check_branch
      %1287 = sbr.rel (0) target = $region57
    $region56: #{tpu_custom_call.1} parent=1 // pred_region
      %1289 = vsyncadd [#allocation4], 0
      %s1291 = sshll.u32 [#allocation11], 4
      %s1292 = int_to_ptr.vmem [resolvable:$true] %s1291
      %s1293 = sshll.u32 %s8, 4
      %s1294 = int_to_ptr.hbm [resolvable:$true] %s1293
      %1296 = dma.vmem_to_hbm [thread:$0]  %s1292, 16, %s1294, [#allocation4]
    $region57: #{tpu_custom_call.1} parent=1 // pred_fallthru
      _
    // Predicated region
    $region58: #{tpu_custom_call.1} parent=1 // pred_check
      _
    $region59: #{tpu_custom_call.1} parent=1 // pred_check_branch
      %1298 = sbr.rel (0) target = $region61
    $region60: #{tpu_custom_call.1} parent=1 // pred_region
      %1300 = dma.done [#allocation4], 16
    $region61: #{tpu_custom_call.1} parent=1 // pred_fallthru
      _
    %1301 = vsyncpa [#allocation3], 1
    %1302 = vsyncpa [#allocation6], 1
    %1303 = vsyncpa [#allocation9], 1
    %1304 = vsyncpa [#allocation4], 1

</llo_original>
